<compile_context>
chip_gen: v7x
topology: tpu7x:2x2x1
jax: 0.10.0
libtpu: 0.0.40
codegen_flags: <defaults>
</compile_context>

<pallas_src>
import math
import functools

import jax
import jax.numpy as jnp
from jax.experimental import pallas as pl
from jax.experimental.pallas import tpu as pltpu


# Set True to use the tanh-approximate GELU (runs on the EUP slot, overlaps
# with MXU work) instead of PyTorch's default exact erf GELU.
USE_APPROX_GELU = False


# ----------------------------------------------------------------------------
# small helpers (traced inside kernels) -- kept in f32
# ----------------------------------------------------------------------------
def _layernorm(x, g, b, eps=1e-6):
    mu = jnp.mean(x, axis=-1, keepdims=True)
    var = jnp.mean((x - mu) ** 2, axis=-1, keepdims=True)
    return (x - mu) * jax.lax.rsqrt(var + eps) * g + b


def _gelu(x):
    if USE_APPROX_GELU:
        c = math.sqrt(2.0 / math.pi)
        return 0.5 * x * (1.0 + jnp.tanh(c * (x + 0.044715 * x * x * x)))
    # nn.GELU() default = exact erf-based GELU
    return 0.5 * x * (1.0 + jax.lax.erf(x * (1.0 / math.sqrt(2.0))))


# ----------------------------------------------------------------------------
# Kernel 1: patch embedding (conv-as-matmul), tiled over rows
# ----------------------------------------------------------------------------
def _patch_embed_kernel(xp_ref, w_ref, b_ref, o_ref):
    # xp: (tm, C*P*P) bf16   w: (C*P*P, E) bf16   b: (1, E) f32
    o_ref[...] = (
        jnp.dot(xp_ref[...], w_ref[...], preferred_element_type=jnp.float32)
        + b_ref[...]
    )


def patch_embed(x_patches_bf16, w_bf16, bias_f32):
    M, K = x_patches_bf16.shape
    E = w_bf16.shape[1]
    tm = M
    for cand in (512, 256, 128, 64, 32, 16, 8):
        if M % cand == 0:
            tm = cand
            break
    # NOTE: weight/bias blocks are constant across the row grid; at these
    # shapes their footprint is small, so default buffering is acceptable.
    return pl.pallas_call(
        _patch_embed_kernel,
        grid=(M // tm,),
        in_specs=[
            pl.BlockSpec((tm, K), lambda i: (i, 0)),
            pl.BlockSpec((K, E), lambda i: (0, 0)),
            pl.BlockSpec((1, E), lambda i: (0, 0)),
        ],
        out_specs=pl.BlockSpec((tm, E), lambda i: (i, 0)),
        out_shape=jax.ShapeDtypeStruct((M, E), jnp.float32),
        compiler_params=pltpu.CompilerParams(dimension_semantics=("parallel",)),
    )(x_patches_bf16, w_bf16, bias_f32)


# ----------------------------------------------------------------------------
# Kernel 2: the full transformer stack, grid = (batch, layer)
# ----------------------------------------------------------------------------
def _vit_layers_kernel(
    x_ref,
    ln1g_ref, ln1b_ref,
    wqkv_ref, bqkv_ref,
    wo_ref, bo_ref,
    ln2g_ref, ln2b_ref,
    w1_ref, b1_ref, w2_ref, b2_ref,
    o_ref,
    ctx_ref,
    *, num_heads,
):
    l = pl.program_id(1)

    # Layer 0: seed the carried activation.  o_ref keeps the same block index
    # across the L axis, so it stays VMEM-resident and is written back to HBM
    # only once per batch element.
    @pl.when(l == 0)
    def _():
        o_ref[0] = x_ref[0]

    x = o_ref[0]                               # (S, E) f32 carried activation
    S, E = x.shape
    Dh = E // num_heads
    scale = 1.0 / math.sqrt(Dh)

    # ---- pre-norm + fused QKV projection (bf16 operands, f32 accumulation) --
    xn = _layernorm(x, ln1g_ref[0], ln1b_ref[0])
    qkv = (
        jnp.dot(xn.astype(jnp.bfloat16), wqkv_ref[0],
                preferred_element_type=jnp.float32)
        + bqkv_ref[0]
    )                                          # (S, 3E) f32
    q = (qkv[:, :E] * scale).astype(jnp.bfloat16)     # 1/sqrt(Dh) folded into q
    k = qkv[:, E:2 * E].astype(jnp.bfloat16)
    v = qkv[:, 2 * E:].astype(jnp.bfloat16)

    # ---- per-head softmax(QK^T)V; contexts land in a (S, E) VMEM scratch so
    # the output projection below is a single full-depth matmul. -------------
    # TODO(synk): for Dh=64 (ViT-B/L) process heads in lane-dense pairs.
    for h in range(num_heads):                 # static unroll over heads
        sl = slice(h * Dh, (h + 1) * Dh)
        s = jax.lax.dot_general(q[:, sl], k[:, sl], (((1,), (1,)), ((), ())),
                                preferred_element_type=jnp.float32)  # (S, S)
        s = s - jnp.max(s, axis=-1, keepdims=True)
        p = jnp.exp(s)
        p = p * pl.reciprocal(jnp.sum(p, axis=-1, keepdims=True), approx=True)
        ctx_ref[:, sl] = jnp.dot(p.astype(jnp.bfloat16), v[:, sl],
                                 preferred_element_type=jnp.float32
                                 ).astype(jnp.bfloat16)

    # ---- one-shot output projection (K = E, full MXU depth) + residual -----
    attn = jnp.dot(ctx_ref[...], wo_ref[0], preferred_element_type=jnp.float32)
    x = x + attn + bo_ref[0]

    # ---- MLP branch ----
    xn2 = _layernorm(x, ln2g_ref[0], ln2b_ref[0])
    h1 = _gelu(
        jnp.dot(xn2.astype(jnp.bfloat16), w1_ref[0],
                preferred_element_type=jnp.float32) + b1_ref[0]
    )
    h2 = jnp.dot(h1.astype(jnp.bfloat16), w2_ref[0],
                 preferred_element_type=jnp.float32) + b2_ref[0]

    o_ref[0] = x + h2                          # residual -> carried activation


def _layers_vmem_limit_bytes(S, E, H):
    # One layer of bf16 weights (double-buffered: prefetch of layer l+1 while
    # computing layer l), f32 biases/LN params, activation blocks, and the
    # major in-kernel temporaries.  Capped at 48 MiB: v7x only has 64 MiB of
    # physical VMEM per TensorCore, so never request all of it.
    w_layer = 2 * (E * 3 * E + E * E + E * H + H * E)       # bf16 weights
    p_layer = 4 * (3 * E + 6 * E + H)                        # biases + LN (f32)
    act = 4 * (2 * S * E)                                    # x block + carried out block
    interm = 4 * S * (3 * E + H) + 4 * S * S + 2 * S * E     # qkv, mlp hidden, scores, ctx
    needed = 2 * (w_layer + p_layer + act) + interm + (4 << 20)
    return int(min(max(needed, 16 << 20), 48 << 20))


def transformer_layers(x, lp, num_heads):
    B, S, E = x.shape
    L = lp["wqkv"].shape[0]
    H = lp["w1"].shape[-1]
    assert E % num_heads == 0

    def xmap(b, l):            # activation blocks: one per batch element
        return (b, 0, 0)

    def lmap(b, l):            # stacked layer params: stream along L axis
        return (l, 0, 0)

    def lspec(d1, d2):
        return pl.BlockSpec((1, d1, d2), lmap)

    in_specs = [
        pl.BlockSpec((1, S, E), xmap),          # x (read only at l == 0)
        lspec(1, E), lspec(1, E),               # ln1 gamma / beta
        lspec(E, 3 * E), lspec(1, 3 * E),       # fused qkv proj
        lspec(E, E), lspec(1, E),               # out proj
        lspec(1, E), lspec(1, E),               # ln2 gamma / beta
        lspec(E, H), lspec(1, H),               # mlp fc1
        lspec(H, E), lspec(1, E),               # mlp fc2
    ]

    return pl.pallas_call(
        functools.partial(_vit_layers_kernel, num_heads=num_heads),
        grid=(B, L),
        in_specs=in_specs,
        out_specs=pl.BlockSpec((1, S, E), xmap),
        out_shape=jax.ShapeDtypeStruct((B, S, E), jnp.float32),
        scratch_shapes=[pltpu.VMEM((S, E), jnp.bfloat16)],   # per-head ctx buffer
        compiler_params=pltpu.CompilerParams(
            dimension_semantics=("parallel", "arbitrary"),
            vmem_limit_bytes=_layers_vmem_limit_bytes(S, E, H),
        ),
    )(
        x,
        lp["ln1_g"], lp["ln1_b"],
        lp["wqkv"], lp["bqkv"],
        lp["wo"], lp["bo"],
        lp["ln2_g"], lp["ln2_b"],
        lp["w1"], lp["b1"],
        lp["w2"], lp["b2"],
    )


# ----------------------------------------------------------------------------
# Kernel 3: final LayerNorm + classification head on the CLS token
# (head weight is pre-padded to a multiple of 128 output columns so the store
#  is lane-dense; logits are sliced back to num_classes outside the kernel)
# ----------------------------------------------------------------------------
def _head_kernel(x_ref, g_ref, b_ref, w_ref, hb_ref, o_ref):
    xn = _layernorm(x_ref[...], g_ref[...], b_ref[...])
    o_ref[...] = (
        jnp.dot(xn.astype(jnp.bfloat16), w_ref[...],
                preferred_element_type=jnp.float32)
        + hb_ref[...]
    )


def final_head(x_cls, ln_g, ln_b, head_w_bf16, head_b):
    B, E = x_cls.shape
    Cpad = head_w_bf16.shape[1]
    return pl.pallas_call(
        _head_kernel,
        out_shape=jax.ShapeDtypeStruct((B, Cpad), jnp.float32),
    )(x_cls, ln_g, ln_b, head_w_bf16, head_b)


# ----------------------------------------------------------------------------
# ViT forward
# ----------------------------------------------------------------------------
@functools.partial(jax.jit, static_argnames=("patch_size", "num_heads",
                                             "num_classes"))
def vit_forward(x, params, *, patch_size, num_heads, num_classes):
    B, C, Himg, Wimg = x.shape
    P = patch_size
    nh, nw = Himg // P, Wimg // P
    E = params["pos_embedding"].shape[-1]

    # patch extraction (pure layout glue) -> (B*N, C*P*P), row-major over (h, w)
    xp = x.reshape(B, C, nh, P, nw, P)
    xp = xp.transpose(0, 2, 4, 1, 3, 5)
    xp = xp.reshape(B * nh * nw, C * P * P).astype(jnp.bfloat16)

    # patch embedding (Pallas matmul, bf16 operands / f32 accumulation)
    patches = patch_embed(xp, params["patch_w"], params["patch_b"])
    patches = patches.reshape(B, nh * nw, E)

    # prepend CLS token, add positional embedding (dropout p=0.0 -> identity)
    cls = jnp.broadcast_to(params["cls_token"], (B, 1, E))
    seq = jnp.concatenate([cls, patches], axis=1)
    seq = seq + params["pos_embedding"]

    # full transformer stack: single Pallas kernel, grid = (batch, layer)
    seq = transformer_layers(seq, params["layers"], num_heads)

    # final LN + head on CLS token (Pallas kernel), drop lane padding
    logits = final_head(
        seq[:, 0], params["ln_g"], params["ln_b"],
        params["head_w"], params["head_b"],
    )
    return logits[:, :num_classes]


# ----------------------------------------------------------------------------
# deterministic parameter construction (weights stored bf16, biases/LN f32;
# per-layer params stacked along a leading L axis for weight streaming)
# ----------------------------------------------------------------------------
def init_params(key, *, in_channels, patch_size, embed_dim, hidden_dim,
                num_layers, num_classes, num_patches):
    keys = iter(jax.random.split(key, 16))

    def w(shape, scale=0.02):
        return (scale * jax.random.normal(next(keys), shape)).astype(jnp.float32)

    E, Hd, L = embed_dim, hidden_dim, num_layers
    P, C = patch_size, in_channels
    Cpad = ((num_classes + 127) // 128) * 128          # lane-dense head output

    head_w = jnp.zeros((E, Cpad), jnp.float32)
    head_w = head_w.at[:, :num_classes].set(w((E, num_classes)))

    params = {
        # conv weight flattened for right-multiply: (C*P*P, E), bf16
        "patch_w": w((C * P * P, E)).astype(jnp.bfloat16),
        "patch_b": jnp.zeros((1, E), jnp.float32),
        "cls_token": w((1, 1, E), scale=1.0),
        "pos_embedding": w((1, num_patches + 1, E), scale=1.0),
        "ln_g": jnp.ones((1, E), jnp.float32),
        "ln_b": jnp.zeros((1, E), jnp.float32),
        "head_w": head_w.astype(jnp.bfloat16),
        "head_b": jnp.zeros((1, Cpad), jnp.float32),
        "layers": {
            "ln1_g": jnp.ones((L, 1, E), jnp.float32),
            "ln1_b": jnp.zeros((L, 1, E), jnp.float32),
            # fused q|k|v projection (matches nn.MultiheadAttention packed in_proj)
            "wqkv": w((L, E, 3 * E)).astype(jnp.bfloat16),
            "bqkv": jnp.zeros((L, 1, 3 * E), jnp.float32),
            "wo": w((L, E, E)).astype(jnp.bfloat16),
            "bo": jnp.zeros((L, 1, E), jnp.float32),
            "ln2_g": jnp.ones((L, 1, E), jnp.float32),
            "ln2_b": jnp.zeros((L, 1, E), jnp.float32),
            "w1": w((L, E, Hd)).astype(jnp.bfloat16),
            "b1": jnp.zeros((L, 1, Hd), jnp.float32),
            "w2": w((L, Hd, E)).astype(jnp.bfloat16),
            "b2": jnp.zeros((L, 1, E), jnp.float32),
        },
    }
    return params


# ----------------------------------------------------------------------------
if __name__ == "__main__":
    # small, forward-consistent shapes (patch_size=16 -> 4 patches, seq len 5)
    B, C, IMG, P = 2, 3, 32, 16
    E, HID, HEADS, LAYERS, CLASSES = 64, 128, 4, 2, 4
    N = (IMG // P) ** 2

    key = jax.random.PRNGKey(0)
    k_x, k_p = jax.random.split(key)
    x = jax.random.normal(k_x, (B, C, IMG, IMG), dtype=jnp.float32)
    params = init_params(
        k_p, in_channels=C, patch_size=P, embed_dim=E, hidden_dim=HID,
        num_layers=LAYERS, num_classes=CLASSES, num_patches=N,
    )

    logits = vit_forward(x, params, patch_size=P, num_heads=HEADS,
                         num_classes=CLASSES)
    logits = jax.block_until_ready(logits)
    assert logits.shape == (B, CLASSES) and logits.dtype == jnp.float32
    assert bool(jnp.all(jnp.isfinite(logits)))
    print("KERNEL_OK")
</pallas_src>

<mosaic_0001>
module attributes {stable_mosaic.version = 11 : i64} {
  func.func @_patch_embed_kernel(%arg0: i32, %arg1: memref<8x768xbf16, #tpu.memory_space<vmem>>, %arg2: memref<768x64xbf16, #tpu.memory_space<vmem>>, %arg3: memref<1x64xf32, #tpu.memory_space<vmem>>, %arg4: memref<8x64xf32, #tpu.memory_space<vmem>>) attributes {dimension_semantics = [#tpu.dimension_semantics<parallel>], iteration_bounds = array<i64: 1>, scalar_prefetch = 0 : i64, scratch_operands = 0 : i64, tpu.core_type = #tpu.core_type<tc>, window_params = [{transform_indices = @transform_0, window_bounds = array<i64: 8, 768>}, {pipeline_mode = #tpu.pipeline_mode<synchronous>, transform_indices = @transform_1, window_bounds = array<i64: 768, 64>}, {pipeline_mode = #tpu.pipeline_mode<synchronous>, transform_indices = @transform_2, window_bounds = array<i64: 1, 64>}, {transform_indices = @transform_3, window_bounds = array<i64: 8, 64>}]} {
    %c0 = arith.constant 0 : index
    %c0_0 = arith.constant 0 : index
    %0 = vector.load %arg1[%c0, %c0_0] : memref<8x768xbf16, #tpu.memory_space<vmem>>, vector<8x768xbf16>
    %c0_1 = arith.constant 0 : index
    %c0_2 = arith.constant 0 : index
    %1 = vector.load %arg2[%c0_1, %c0_2] : memref<768x64xbf16, #tpu.memory_space<vmem>>, vector<768x64xbf16>
    %cst = arith.constant dense<0.000000e+00> : vector<8x64xf32>
    %2 = tpu.matmul %0, %1, %cst {dimension_numbers = #tpu.dot_dimension_numbers<[1], [0], [0], [1], [0, 0, 1, 1], [], []>} : vector<8x768xbf16>, vector<768x64xbf16>, vector<8x64xf32> -> vector<8x64xf32>
    %c0_3 = arith.constant 0 : index
    %c0_4 = arith.constant 0 : index
    %3 = vector.load %arg3[%c0_3, %c0_4] : memref<1x64xf32, #tpu.memory_space<vmem>>, vector<1x64xf32>
    %4 = vector.broadcast %3 : vector<1x64xf32> to vector<8x64xf32>
    %5 = arith.addf %2, %4 : vector<8x64xf32>
    %c0_5 = arith.constant 0 : index
    %c0_6 = arith.constant 0 : index
    %6 = vector.load %arg4[%c0_5, %c0_6] : memref<8x64xf32, #tpu.memory_space<vmem>>, vector<8x64xf32>
    tpu.vector_store %arg4[%c0_5, %c0_6], %5 {strides = array<i32>} : memref<8x64xf32, #tpu.memory_space<vmem>>, vector<8x64xf32>,
    return
  }
  func.func @transform_0(%arg0: i32) -> (i32, i32) {
    %c0_i32 = arith.constant 0 : i32
    %c0_i32_0 = arith.constant 0 : i32
    return %arg0, %c0_i32 : i32, i32
  }
  func.func @transform_1(%arg0: i32) -> (i32, i32) {
    %c0_i32 = arith.constant 0 : i32
    %c0_i32_0 = arith.constant 0 : i32
    %c0_i32_1 = arith.constant 0 : i32
    return %c0_i32, %c0_i32_0 : i32, i32
  }
  func.func @transform_2(%arg0: i32) -> (i32, i32) {
    %c0_i32 = arith.constant 0 : i32
    %c0_i32_0 = arith.constant 0 : i32
    %c0_i32_1 = arith.constant 0 : i32
    return %c0_i32, %c0_i32_0 : i32, i32
  }
  func.func @transform_3(%arg0: i32) -> (i32, i32) {
    %c0_i32 = arith.constant 0 : i32
    %c0_i32_0 = arith.constant 0 : i32
    return %arg0, %c0_i32 : i32, i32
  }
}

module attributes {stable_mosaic.version = 11 : i64} {
  func.func @_vit_layers_kernel(%arg0: i32, %arg1: i32, %arg2: memref<1x5x64xf32, #tpu.memory_space<vmem>>, %arg3: memref<1x1x64xf32, #tpu.memory_space<vmem>>, %arg4: memref<1x1x64xf32, #tpu.memory_space<vmem>>, %arg5: memref<1x64x192xbf16, #tpu.memory_space<vmem>>, %arg6: memref<1x1x192xf32, #tpu.memory_space<vmem>>, %arg7: memref<1x64x64xbf16, #tpu.memory_space<vmem>>, %arg8: memref<1x1x64xf32, #tpu.memory_space<vmem>>, %arg9: memref<1x1x64xf32, #tpu.memory_space<vmem>>, %arg10: memref<1x1x64xf32, #tpu.memory_space<vmem>>, %arg11: memref<1x64x128xbf16, #tpu.memory_space<vmem>>, %arg12: memref<1x1x128xf32, #tpu.memory_space<vmem>>, %arg13: memref<1x128x64xbf16, #tpu.memory_space<vmem>>, %arg14: memref<1x1x64xf32, #tpu.memory_space<vmem>>, %arg15: memref<1x5x64xf32, #tpu.memory_space<vmem>>, %arg16: memref<5x64xbf16, #tpu.memory_space<vmem>>) attributes {dimension_semantics = [#tpu.dimension_semantics<parallel>, #tpu.dimension_semantics<arbitrary>], iteration_bounds = array<i64: 2, 2>, scalar_prefetch = 0 : i64, scratch_operands = 1 : i64, tpu.core_type = #tpu.core_type<tc>, window_params = [{transform_indices = @transform_0, window_bounds = array<i64: 1, 5, 64>}, {transform_indices = @transform_1, window_bounds = array<i64: 1, 1, 64>}, {transform_indices = @transform_2, window_bounds = array<i64: 1, 1, 64>}, {transform_indices = @transform_3, window_bounds = array<i64: 1, 64, 192>}, {transform_indices = @transform_4, window_bounds = array<i64: 1, 1, 192>}, {transform_indices = @transform_5, window_bounds = array<i64: 1, 64, 64>}, {transform_indices = @transform_6, window_bounds = array<i64: 1, 1, 64>}, {transform_indices = @transform_7, window_bounds = array<i64: 1, 1, 64>}, {transform_indices = @transform_8, window_bounds = array<i64: 1, 1, 64>}, {transform_indices = @transform_9, window_bounds = array<i64: 1, 64, 128>}, {transform_indices = @transform_10, window_bounds = array<i64: 1, 1, 128>}, {transform_indices = @transform_11, window_bounds = array<i64: 1, 128, 64>}, {transform_indices = @transform_12, window_bounds = array<i64: 1, 1, 64>}, {transform_indices = @transform_13, window_bounds = array<i64: 1, 5, 64>}]} {
    %c0_i32 = arith.constant 0 : i32
    %0 = arith.cmpi eq, %arg1, %c0_i32 : i32
    %1 = arith.extui %0 : i1 to i32
    %c0_i32_0 = arith.constant 0 : i32
    %2 = arith.cmpi ne, %1, %c0_i32_0 : i32
    scf.if %2 {
      %c0_82 = arith.constant 0 : index
      %c0_83 = arith.constant 0 : index
      %c0_84 = arith.constant 0 : index
      %182 = vector.load %arg2[%c0_82, %c0_83, %c0_84] : memref<1x5x64xf32, #tpu.memory_space<vmem>>, vector<1x5x64xf32>
      %183 = vector.shape_cast %182 : vector<1x5x64xf32> to vector<5x64xf32>
      %c0_85 = arith.constant 0 : index
      %c0_86 = arith.constant 0 : index
      %c0_87 = arith.constant 0 : index
      %184 = vector.load %arg15[%c0_85, %c0_86, %c0_87] : memref<1x5x64xf32, #tpu.memory_space<vmem>>, vector<1x5x64xf32>
      %185 = vector.shape_cast %184 : vector<1x5x64xf32> to vector<5x64xf32>
      %186 = vector.shape_cast %183 : vector<5x64xf32> to vector<1x5x64xf32>
      tpu.vector_store %arg15[%c0_85, %c0_86, %c0_87], %186 {strides = array<i32>} : memref<1x5x64xf32, #tpu.memory_space<vmem>>, vector<1x5x64xf32>,
    } else {
    }
    %c0 = arith.constant 0 : index
    %c0_1 = arith.constant 0 : index
    %c0_2 = arith.constant 0 : index
    %3 = vector.load %arg15[%c0, %c0_1, %c0_2] : memref<1x5x64xf32, #tpu.memory_space<vmem>>, vector<1x5x64xf32>
    %4 = vector.shape_cast %3 : vector<1x5x64xf32> to vector<5x64xf32>
    %c0_3 = arith.constant 0 : index
    %c0_4 = arith.constant 0 : index
    %c0_5 = arith.constant 0 : index
    %5 = vector.load %arg3[%c0_3, %c0_4, %c0_5] : memref<1x1x64xf32, #tpu.memory_space<vmem>>, vector<1x1x64xf32>
    %6 = vector.shape_cast %5 : vector<1x1x64xf32> to vector<1x64xf32>
    %c0_6 = arith.constant 0 : index
    %c0_7 = arith.constant 0 : index
    %c0_8 = arith.constant 0 : index
    %7 = vector.load %arg4[%c0_6, %c0_7, %c0_8] : memref<1x1x64xf32, #tpu.memory_space<vmem>>, vector<1x1x64xf32>
    %8 = vector.shape_cast %7 : vector<1x1x64xf32> to vector<1x64xf32>
    %cst = arith.constant dense<0.000000e+00> : vector<5xf32>
    %9 = vector.multi_reduction <add>, %4, %cst [1] : vector<5x64xf32> to vector<5xf32>
    %10 = vector.shape_cast %9 : vector<5xf32> to vector<5x1xf32>
    %cst_9 = arith.constant 6.400000e+01 : f32
    %11 = vector.broadcast %cst_9 : f32 to vector<5x1xf32>
    %12 = arith.divf %10, %11 : vector<5x1xf32>
    %13 = vector.broadcast %12 : vector<5x1xf32> to vector<5x64xf32>
    %14 = arith.subf %4, %13 : vector<5x64xf32>
    %15 = arith.mulf %14, %14 : vector<5x64xf32>
    %cst_10 = arith.constant dense<0.000000e+00> : vector<5xf32>
    %16 = vector.multi_reduction <add>, %15, %cst_10 [1] : vector<5x64xf32> to vector<5xf32>
    %17 = vector.shape_cast %16 : vector<5xf32> to vector<5x1xf32>
    %cst_11 = arith.constant 6.400000e+01 : f32
    %18 = vector.broadcast %cst_11 : f32 to vector<5x1xf32>
    %19 = arith.divf %17, %18 : vector<5x1xf32>
    %20 = vector.broadcast %12 : vector<5x1xf32> to vector<5x64xf32>
    %21 = arith.subf %4, %20 : vector<5x64xf32>
    %cst_12 = arith.constant 9.99999997E-7 : f32
    %22 = vector.broadcast %cst_12 : f32 to vector<5x1xf32>
    %23 = arith.addf %19, %22 : vector<5x1xf32>
    %24 = math.rsqrt %23 : vector<5x1xf32>
    %25 = vector.broadcast %24 : vector<5x1xf32> to vector<5x64xf32>
    %26 = arith.mulf %21, %25 : vector<5x64xf32>
    %27 = vector.broadcast %6 : vector<1x64xf32> to vector<5x64xf32>
    %28 = arith.mulf %26, %27 : vector<5x64xf32>
    %29 = vector.broadcast %8 : vector<1x64xf32> to vector<5x64xf32>
    %30 = arith.addf %28, %29 : vector<5x64xf32>
    %31 = arith.truncf %30 : vector<5x64xf32> to vector<5x64xbf16>
    %c0_13 = arith.constant 0 : index
    %c0_14 = arith.constant 0 : index
    %c0_15 = arith.constant 0 : index
    %32 = vector.load %arg5[%c0_13, %c0_14, %c0_15] : memref<1x64x192xbf16, #tpu.memory_space<vmem>>, vector<1x64x192xbf16>
    %33 = vector.shape_cast %32 : vector<1x64x192xbf16> to vector<64x192xbf16>
    %cst_16 = arith.constant dense<0.000000e+00> : vector<5x192xf32>
    %34 = tpu.matmul %31, %33, %cst_16 {dimension_numbers = #tpu.dot_dimension_numbers<[1], [0], [0], [1], [0, 0, 1, 1], [], []>} : vector<5x64xbf16>, vector<64x192xbf16>, vector<5x192xf32> -> vector<5x192xf32>
    %c0_17 = arith.constant 0 : index
    %c0_18 = arith.constant 0 : index
    %c0_19 = arith.constant 0 : index
    %35 = vector.load %arg6[%c0_17, %c0_18, %c0_19] : memref<1x1x192xf32, #tpu.memory_space<vmem>>, vector<1x1x192xf32>
    %36 = vector.shape_cast %35 : vector<1x1x192xf32> to vector<1x192xf32>
    %37 = vector.broadcast %36 : vector<1x192xf32> to vector<5x192xf32>
    %38 = arith.addf %34, %37 : vector<5x192xf32>
    %39 = vector.extract_strided_slice %38 {offsets = [0, 0], sizes = [5, 64], strides = [1, 1]} : vector<5x192xf32> to vector<5x64xf32>
    %cst_20 = arith.constant 2.500000e-01 : f32
    %40 = vector.broadcast %cst_20 : f32 to vector<5x64xf32>
    %41 = arith.mulf %39, %40 : vector<5x64xf32>
    %42 = arith.truncf %41 : vector<5x64xf32> to vector<5x64xbf16>
    %43 = vector.extract_strided_slice %38 {offsets = [0, 64], sizes = [5, 64], strides = [1, 1]} : vector<5x192xf32> to vector<5x64xf32>
    %44 = arith.truncf %43 : vector<5x64xf32> to vector<5x64xbf16>
    %45 = vector.extract_strided_slice %38 {offsets = [0, 128], sizes = [5, 64], strides = [1, 1]} : vector<5x192xf32> to vector<5x64xf32>
    %46 = arith.truncf %45 : vector<5x64xf32> to vector<5x64xbf16>
    %47 = vector.extract_strided_slice %42 {offsets = [0, 0], sizes = [5, 16], strides = [1, 1]} : vector<5x64xbf16> to vector<5x16xbf16>
    %48 = vector.extract_strided_slice %44 {offsets = [0, 0], sizes = [5, 16], strides = [1, 1]} : vector<5x64xbf16> to vector<5x16xbf16>
    %cst_21 = arith.constant dense<0.000000e+00> : vector<5x5xf32>
    %49 = tpu.matmul %47, %48, %cst_21 {dimension_numbers = #tpu.dot_dimension_numbers<[1], [1], [0], [0], [0, 0, 1, 0], [], []>} : vector<5x16xbf16>, vector<5x16xbf16>, vector<5x5xf32> -> vector<5x5xf32>
    %cst_22 = arith.constant dense<0xFF800000> : vector<5xf32>
    %50 = vector.multi_reduction <maximumf>, %49, %cst_22 [1] : vector<5x5xf32> to vector<5xf32>
    %51 = vector.shape_cast %50 : vector<5xf32> to vector<5x1xf32>
    %52 = vector.broadcast %51 : vector<5x1xf32> to vector<5x5xf32>
    %53 = arith.subf %49, %52 : vector<5x5xf32>
    %54 = math.exp %53 : vector<5x5xf32>
    %cst_23 = arith.constant dense<0.000000e+00> : vector<5xf32>
    %55 = vector.multi_reduction <add>, %54, %cst_23 [1] : vector<5x5xf32> to vector<5xf32>
    %56 = vector.shape_cast %55 : vector<5xf32> to vector<5x1xf32>
    %57 = tpu.reciprocal %56 {approx = true} : vector<5x1xf32> -> vector<5x1xf32>
    %58 = vector.broadcast %57 : vector<5x1xf32> to vector<5x5xf32>
    %59 = arith.mulf %54, %58 : vector<5x5xf32>
    %60 = arith.truncf %59 : vector<5x5xf32> to vector<5x5xbf16>
    %61 = vector.extract_strided_slice %46 {offsets = [0, 0], sizes = [5, 16], strides = [1, 1]} : vector<5x64xbf16> to vector<5x16xbf16>
    %cst_24 = arith.constant dense<0.000000e+00> : vector<5x16xf32>
    %62 = tpu.matmul %60, %61, %cst_24 {dimension_numbers = #tpu.dot_dimension_numbers<[1], [0], [0], [1], [0, 0, 1, 1], [], []>} : vector<5x5xbf16>, vector<5x16xbf16>, vector<5x16xf32> -> vector<5x16xf32>
    %63 = arith.truncf %62 : vector<5x16xf32> to vector<5x16xbf16>
    %c0_25 = arith.constant 0 : index
    %c0_26 = arith.constant 0 : index
    %64 = vector.load %arg16[%c0_25, %c0_26] : memref<5x64xbf16, #tpu.memory_space<vmem>>, vector<5x16xbf16>
    tpu.vector_store %arg16[%c0_25, %c0_26], %63 {strides = array<i32>} : memref<5x64xbf16, #tpu.memory_space<vmem>>, vector<5x16xbf16>,
    %65 = vector.extract_strided_slice %42 {offsets = [0, 16], sizes = [5, 16], strides = [1, 1]} : vector<5x64xbf16> to vector<5x16xbf16>
    %66 = vector.extract_strided_slice %44 {offsets = [0, 16], sizes = [5, 16], strides = [1, 1]} : vector<5x64xbf16> to vector<5x16xbf16>
    %cst_27 = arith.constant dense<0.000000e+00> : vector<5x5xf32>
    %67 = tpu.matmul %65, %66, %cst_27 {dimension_numbers = #tpu.dot_dimension_numbers<[1], [1], [0], [0], [0, 0, 1, 0], [], []>} : vector<5x16xbf16>, vector<5x16xbf16>, vector<5x5xf32> -> vector<5x5xf32>
    %cst_28 = arith.constant dense<0xFF800000> : vector<5xf32>
    %68 = vector.multi_reduction <maximumf>, %67, %cst_28 [1] : vector<5x5xf32> to vector<5xf32>
    %69 = vector.shape_cast %68 : vector<5xf32> to vector<5x1xf32>
    %70 = vector.broadcast %69 : vector<5x1xf32> to vector<5x5xf32>
    %71 = arith.subf %67, %70 : vector<5x5xf32>
    %72 = math.exp %71 : vector<5x5xf32>
    %cst_29 = arith.constant dense<0.000000e+00> : vector<5xf32>
    %73 = vector.multi_reduction <add>, %72, %cst_29 [1] : vector<5x5xf32> to vector<5xf32>
    %74 = vector.shape_cast %73 : vector<5xf32> to vector<5x1xf32>
    %75 = tpu.reciprocal %74 {approx = true} : vector<5x1xf32> -> vector<5x1xf32>
    %76 = vector.broadcast %75 : vector<5x1xf32> to vector<5x5xf32>
    %77 = arith.mulf %72, %76 : vector<5x5xf32>
    %78 = arith.truncf %77 : vector<5x5xf32> to vector<5x5xbf16>
    %79 = vector.extract_strided_slice %46 {offsets = [0, 16], sizes = [5, 16], strides = [1, 1]} : vector<5x64xbf16> to vector<5x16xbf16>
    %cst_30 = arith.constant dense<0.000000e+00> : vector<5x16xf32>
    %80 = tpu.matmul %78, %79, %cst_30 {dimension_numbers = #tpu.dot_dimension_numbers<[1], [0], [0], [1], [0, 0, 1, 1], [], []>} : vector<5x5xbf16>, vector<5x16xbf16>, vector<5x16xf32> -> vector<5x16xf32>
    %81 = arith.truncf %80 : vector<5x16xf32> to vector<5x16xbf16>
    %c0_31 = arith.constant 0 : index
    %c16 = arith.constant 16 : index
    %82 = vector.load %arg16[%c0_31, %c16] : memref<5x64xbf16, #tpu.memory_space<vmem>>, vector<5x16xbf16>
    tpu.vector_store %arg16[%c0_31, %c16], %81 {strides = array<i32>} : memref<5x64xbf16, #tpu.memory_space<vmem>>, vector<5x16xbf16>,
    %83 = vector.extract_strided_slice %42 {offsets = [0, 32], sizes = [5, 16], strides = [1, 1]} : vector<5x64xbf16> to vector<5x16xbf16>
    %84 = vector.extract_strided_slice %44 {offsets = [0, 32], sizes = [5, 16], strides = [1, 1]} : vector<5x64xbf16> to vector<5x16xbf16>
    %cst_32 = arith.constant dense<0.000000e+00> : vector<5x5xf32>
    %85 = tpu.matmul %83, %84, %cst_32 {dimension_numbers = #tpu.dot_dimension_numbers<[1], [1], [0], [0], [0, 0, 1, 0], [], []>} : vector<5x16xbf16>, vector<5x16xbf16>, vector<5x5xf32> -> vector<5x5xf32>
    %cst_33 = arith.constant dense<0xFF800000> : vector<5xf32>
    %86 = vector.multi_reduction <maximumf>, %85, %cst_33 [1] : vector<5x5xf32> to vector<5xf32>
    %87 = vector.shape_cast %86 : vector<5xf32> to vector<5x1xf32>
    %88 = vector.broadcast %87 : vector<5x1xf32> to vector<5x5xf32>
    %89 = arith.subf %85, %88 : vector<5x5xf32>
    %90 = math.exp %89 : vector<5x5xf32>
    %cst_34 = arith.constant dense<0.000000e+00> : vector<5xf32>
    %91 = vector.multi_reduction <add>, %90, %cst_34 [1] : vector<5x5xf32> to vector<5xf32>
    %92 = vector.shape_cast %91 : vector<5xf32> to vector<5x1xf32>
    %93 = tpu.reciprocal %92 {approx = true} : vector<5x1xf32> -> vector<5x1xf32>
    %94 = vector.broadcast %93 : vector<5x1xf32> to vector<5x5xf32>
    %95 = arith.mulf %90, %94 : vector<5x5xf32>
    %96 = arith.truncf %95 : vector<5x5xf32> to vector<5x5xbf16>
    %97 = vector.extract_strided_slice %46 {offsets = [0, 32], sizes = [5, 16], strides = [1, 1]} : vector<5x64xbf16> to vector<5x16xbf16>
    %cst_35 = arith.constant dense<0.000000e+00> : vector<5x16xf32>
    %98 = tpu.matmul %96, %97, %cst_35 {dimension_numbers = #tpu.dot_dimension_numbers<[1], [0], [0], [1], [0, 0, 1, 1], [], []>} : vector<5x5xbf16>, vector<5x16xbf16>, vector<5x16xf32> -> vector<5x16xf32>
    %99 = arith.truncf %98 : vector<5x16xf32> to vector<5x16xbf16>
    %c0_36 = arith.constant 0 : index
    %c32 = arith.constant 32 : index
    %100 = vector.load %arg16[%c0_36, %c32] : memref<5x64xbf16, #tpu.memory_space<vmem>>, vector<5x16xbf16>
    tpu.vector_store %arg16[%c0_36, %c32], %99 {strides = array<i32>} : memref<5x64xbf16, #tpu.memory_space<vmem>>, vector<5x16xbf16>,
    %101 = vector.extract_strided_slice %42 {offsets = [0, 48], sizes = [5, 16], strides = [1, 1]} : vector<5x64xbf16> to vector<5x16xbf16>
    %102 = vector.extract_strided_slice %44 {offsets = [0, 48], sizes = [5, 16], strides = [1, 1]} : vector<5x64xbf16> to vector<5x16xbf16>
    %cst_37 = arith.constant dense<0.000000e+00> : vector<5x5xf32>
    %103 = tpu.matmul %101, %102, %cst_37 {dimension_numbers = #tpu.dot_dimension_numbers<[1], [1], [0], [0], [0, 0, 1, 0], [], []>} : vector<5x16xbf16>, vector<5x16xbf16>, vector<5x5xf32> -> vector<5x5xf32>
    %cst_38 = arith.constant dense<0xFF800000> : vector<5xf32>
    %104 = vector.multi_reduction <maximumf>, %103, %cst_38 [1] : vector<5x5xf32> to vector<5xf32>
    %105 = vector.shape_cast %104 : vector<5xf32> to vector<5x1xf32>
    %106 = vector.broadcast %105 : vector<5x1xf32> to vector<5x5xf32>
    %107 = arith.subf %103, %106 : vector<5x5xf32>
    %108 = math.exp %107 : vector<5x5xf32>
    %cst_39 = arith.constant dense<0.000000e+00> : vector<5xf32>
    %109 = vector.multi_reduction <add>, %108, %cst_39 [1] : vector<5x5xf32> to vector<5xf32>
    %110 = vector.shape_cast %109 : vector<5xf32> to vector<5x1xf32>
    %111 = tpu.reciprocal %110 {approx = true} : vector<5x1xf32> -> vector<5x1xf32>
    %112 = vector.broadcast %111 : vector<5x1xf32> to vector<5x5xf32>
    %113 = arith.mulf %108, %112 : vector<5x5xf32>
    %114 = arith.truncf %113 : vector<5x5xf32> to vector<5x5xbf16>
    %115 = vector.extract_strided_slice %46 {offsets = [0, 48], sizes = [5, 16], strides = [1, 1]} : vector<5x64xbf16> to vector<5x16xbf16>
    %cst_40 = arith.constant dense<0.000000e+00> : vector<5x16xf32>
    %116 = tpu.matmul %114, %115, %cst_40 {dimension_numbers = #tpu.dot_dimension_numbers<[1], [0], [0], [1], [0, 0, 1, 1], [], []>} : vector<5x5xbf16>, vector<5x16xbf16>, vector<5x16xf32> -> vector<5x16xf32>
    %117 = arith.truncf %116 : vector<5x16xf32> to vector<5x16xbf16>
    %c0_41 = arith.constant 0 : index
    %c48 = arith.constant 48 : index
    %118 = vector.load %arg16[%c0_41, %c48] : memref<5x64xbf16, #tpu.memory_space<vmem>>, vector<5x16xbf16>
    tpu.vector_store %arg16[%c0_41, %c48], %117 {strides = array<i32>} : memref<5x64xbf16, #tpu.memory_space<vmem>>, vector<5x16xbf16>,
    %c0_42 = arith.constant 0 : index
    %c0_43 = arith.constant 0 : index
    %119 = vector.load %arg16[%c0_42, %c0_43] : memref<5x64xbf16, #tpu.memory_space<vmem>>, vector<5x64xbf16>
    %c0_44 = arith.constant 0 : index
    %c0_45 = arith.constant 0 : index
    %c0_46 = arith.constant 0 : index
    %120 = vector.load %arg7[%c0_44, %c0_45, %c0_46] : memref<1x64x64xbf16, #tpu.memory_space<vmem>>, vector<1x64x64xbf16>
    %121 = vector.shape_cast %120 : vector<1x64x64xbf16> to vector<64x64xbf16>
    %cst_47 = arith.constant dense<0.000000e+00> : vector<5x64xf32>
    %122 = tpu.matmul %119, %121, %cst_47 {dimension_numbers = #tpu.dot_dimension_numbers<[1], [0], [0], [1], [0, 0, 1, 1], [], []>} : vector<5x64xbf16>, vector<64x64xbf16>, vector<5x64xf32> -> vector<5x64xf32>
    %123 = arith.addf %4, %122 : vector<5x64xf32>
    %c0_48 = arith.constant 0 : index
    %c0_49 = arith.constant 0 : index
    %c0_50 = arith.constant 0 : index
    %124 = vector.load %arg8[%c0_48, %c0_49, %c0_50] : memref<1x1x64xf32, #tpu.memory_space<vmem>>, vector<1x1x64xf32>
    %125 = vector.shape_cast %124 : vector<1x1x64xf32> to vector<1x64xf32>
    %126 = vector.broadcast %125 : vector<1x64xf32> to vector<5x64xf32>
    %127 = arith.addf %123, %126 : vector<5x64xf32>
    %c0_51 = arith.constant 0 : index
    %c0_52 = arith.constant 0 : index
    %c0_53 = arith.constant 0 : index
    %128 = vector.load %arg9[%c0_51, %c0_52, %c0_53] : memref<1x1x64xf32, #tpu.memory_space<vmem>>, vector<1x1x64xf32>
    %129 = vector.shape_cast %128 : vector<1x1x64xf32> to vector<1x64xf32>
    %c0_54 = arith.constant 0 : index
    %c0_55 = arith.constant 0 : index
    %c0_56 = arith.constant 0 : index
    %130 = vector.load %arg10[%c0_54, %c0_55, %c0_56] : memref<1x1x64xf32, #tpu.memory_space<vmem>>, vector<1x1x64xf32>
    %131 = vector.shape_cast %130 : vector<1x1x64xf32> to vector<1x64xf32>
    %cst_57 = arith.constant dense<0.000000e+00> : vector<5xf32>
    %132 = vector.multi_reduction <add>, %127, %cst_57 [1] : vector<5x64xf32> to vector<5xf32>
    %133 = vector.shape_cast %132 : vector<5xf32> to vector<5x1xf32>
    %cst_58 = arith.constant 6.400000e+01 : f32
    %134 = vector.broadcast %cst_58 : f32 to vector<5x1xf32>
    %135 = arith.divf %133, %134 : vector<5x1xf32>
    %136 = vector.broadcast %135 : vector<5x1xf32> to vector<5x64xf32>
    %137 = arith.subf %127, %136 : vector<5x64xf32>
    %138 = arith.mulf %137, %137 : vector<5x64xf32>
    %cst_59 = arith.constant dense<0.000000e+00> : vector<5xf32>
    %139 = vector.multi_reduction <add>, %138, %cst_59 [1] : vector<5x64xf32> to vector<5xf32>
    %140 = vector.shape_cast %139 : vector<5xf32> to vector<5x1xf32>
    %cst_60 = arith.constant 6.400000e+01 : f32
    %141 = vector.broadcast %cst_60 : f32 to vector<5x1xf32>
    %142 = arith.divf %140, %141 : vector<5x1xf32>
    %143 = vector.broadcast %135 : vector<5x1xf32> to vector<5x64xf32>
    %144 = arith.subf %127, %143 : vector<5x64xf32>
    %cst_61 = arith.constant 9.99999997E-7 : f32
    %145 = vector.broadcast %cst_61 : f32 to vector<5x1xf32>
    %146 = arith.addf %142, %145 : vector<5x1xf32>
    %147 = math.rsqrt %146 : vector<5x1xf32>
    %148 = vector.broadcast %147 : vector<5x1xf32> to vector<5x64xf32>
    %149 = arith.mulf %144, %148 : vector<5x64xf32>
    %150 = vector.broadcast %129 : vector<1x64xf32> to vector<5x64xf32>
    %151 = arith.mulf %149, %150 : vector<5x64xf32>
    %152 = vector.broadcast %131 : vector<1x64xf32> to vector<5x64xf32>
    %153 = arith.addf %151, %152 : vector<5x64xf32>
    %154 = arith.truncf %153 : vector<5x64xf32> to vector<5x64xbf16>
    %c0_62 = arith.constant 0 : index
    %c0_63 = arith.constant 0 : index
    %c0_64 = arith.constant 0 : index
    %155 = vector.load %arg11[%c0_62, %c0_63, %c0_64] : memref<1x64x128xbf16, #tpu.memory_space<vmem>>, vector<1x64x128xbf16>
    %156 = vector.shape_cast %155 : vector<1x64x128xbf16> to vector<64x128xbf16>
    %cst_65 = arith.constant dense<0.000000e+00> : vector<5x128xf32>
    %157 = tpu.matmul %154, %156, %cst_65 {dimension_numbers = #tpu.dot_dimension_numbers<[1], [0], [0], [1], [0, 0, 1, 1], [], []>} : vector<5x64xbf16>, vector<64x128xbf16>, vector<5x128xf32> -> vector<5x128xf32>
    %c0_66 = arith.constant 0 : index
    %c0_67 = arith.constant 0 : index
    %c0_68 = arith.constant 0 : index
    %158 = vector.load %arg12[%c0_66, %c0_67, %c0_68] : memref<1x1x128xf32, #tpu.memory_space<vmem>>, vector<1x1x128xf32>
    %159 = vector.shape_cast %158 : vector<1x1x128xf32> to vector<1x128xf32>
    %160 = vector.broadcast %159 : vector<1x128xf32> to vector<5x128xf32>
    %161 = arith.addf %157, %160 : vector<5x128xf32>
    %cst_69 = arith.constant 5.000000e-01 : f32
    %162 = vector.broadcast %cst_69 : f32 to vector<5x128xf32>
    %163 = arith.mulf %162, %161 : vector<5x128xf32>
    %cst_70 = arith.constant 0.707106769 : f32
    %164 = vector.broadcast %cst_70 : f32 to vector<5x128xf32>
    %165 = arith.mulf %161, %164 : vector<5x128xf32>
    %166 = math.erf %165 : vector<5x128xf32>
    %cst_71 = arith.constant 1.000000e+00 : f32
    %167 = vector.broadcast %cst_71 : f32 to vector<5x128xf32>
    %168 = arith.addf %167, %166 : vector<5x128xf32>
    %169 = arith.mulf %163, %168 : vector<5x128xf32>
    %170 = arith.truncf %169 : vector<5x128xf32> to vector<5x128xbf16>
    %c0_72 = arith.constant 0 : index
    %c0_73 = arith.constant 0 : index
    %c0_74 = arith.constant 0 : index
    %171 = vector.load %arg13[%c0_72, %c0_73, %c0_74] : memref<1x128x64xbf16, #tpu.memory_space<vmem>>, vector<1x128x64xbf16>
    %172 = vector.shape_cast %171 : vector<1x128x64xbf16> to vector<128x64xbf16>
    %cst_75 = arith.constant dense<0.000000e+00> : vector<5x64xf32>
    %173 = tpu.matmul %170, %172, %cst_75 {dimension_numbers = #tpu.dot_dimension_numbers<[1], [0], [0], [1], [0, 0, 1, 1], [], []>} : vector<5x128xbf16>, vector<128x64xbf16>, vector<5x64xf32> -> vector<5x64xf32>
    %c0_76 = arith.constant 0 : index
    %c0_77 = arith.constant 0 : index
    %c0_78 = arith.constant 0 : index
    %174 = vector.load %arg14[%c0_76, %c0_77, %c0_78] : memref<1x1x64xf32, #tpu.memory_space<vmem>>, vector<1x1x64xf32>
    %175 = vector.shape_cast %174 : vector<1x1x64xf32> to vector<1x64xf32>
    %176 = vector.broadcast %175 : vector<1x64xf32> to vector<5x64xf32>
    %177 = arith.addf %173, %176 : vector<5x64xf32>
    %178 = arith.addf %127, %177 : vector<5x64xf32>
    %c0_79 = arith.constant 0 : index
    %c0_80 = arith.constant 0 : index
    %c0_81 = arith.constant 0 : index
    %179 = vector.load %arg15[%c0_79, %c0_80, %c0_81] : memref<1x5x64xf32, #tpu.memory_space<vmem>>, vector<1x5x64xf32>
    %180 = vector.shape_cast %179 : vector<1x5x64xf32> to vector<5x64xf32>
    %181 = vector.shape_cast %178 : vector<5x64xf32> to vector<1x5x64xf32>
    tpu.vector_store %arg15[%c0_79, %c0_80, %c0_81], %181 {strides = array<i32>} : memref<1x5x64xf32, #tpu.memory_space<vmem>>, vector<1x5x64xf32>,
    return
  }
  func.func @transform_0(%arg0: i32, %arg1: i32) -> (i32, i32, i32) {
    %c0_i32 = arith.constant 0 : i32
    %c0_i32_0 = arith.constant 0 : i32
    %c0_i32_1 = arith.constant 0 : i32
    return %arg0, %c0_i32, %c0_i32_0 : i32, i32, i32
  }
  func.func @transform_1(%arg0: i32, %arg1: i32) -> (i32, i32, i32) {
    %c0_i32 = arith.constant 0 : i32
    %c0_i32_0 = arith.constant 0 : i32
    %c0_i32_1 = arith.constant 0 : i32
    return %arg1, %c0_i32, %c0_i32_0 : i32, i32, i32
  }
  func.func @transform_2(%arg0: i32, %arg1: i32) -> (i32, i32, i32) {
    %c0_i32 = arith.constant 0 : i32
    %c0_i32_0 = arith.constant 0 : i32
    %c0_i32_1 = arith.constant 0 : i32
    return %arg1, %c0_i32, %c0_i32_0 : i32, i32, i32
  }
  func.func @transform_3(%arg0: i32, %arg1: i32) -> (i32, i32, i32) {
    %c0_i32 = arith.constant 0 : i32
    %c0_i32_0 = arith.constant 0 : i32
    %c0_i32_1 = arith.constant 0 : i32
    return %arg1, %c0_i32, %c0_i32_0 : i32, i32, i32
  }
  func.func @transform_4(%arg0: i32, %arg1: i32) -> (i32, i32, i32) {
    %c0_i32 = arith.constant 0 : i32
    %c0_i32_0 = arith.constant 0 : i32
    %c0_i32_1 = arith.constant 0 : i32
    return %arg1, %c0_i32, %c0_i32_0 : i32, i32, i32
  }
  func.func @transform_5(%arg0: i32, %arg1: i32) -> (i32, i32, i32) {
    %c0_i32 = arith.constant 0 : i32
    %c0_i32_0 = arith.constant 0 : i32
    %c0_i32_1 = arith.constant 0 : i32
    return %arg1, %c0_i32, %c0_i32_0 : i32, i32, i32
  }
  func.func @transform_6(%arg0: i32, %arg1: i32) -> (i32, i32, i32) {
    %c0_i32 = arith.constant 0 : i32
    %c0_i32_0 = arith.constant 0 : i32
    %c0_i32_1 = arith.constant 0 : i32
    return %arg1, %c0_i32, %c0_i32_0 : i32, i32, i32
  }
  func.func @transform_7(%arg0: i32, %arg1: i32) -> (i32, i32, i32) {
    %c0_i32 = arith.constant 0 : i32
    %c0_i32_0 = arith.constant 0 : i32
    %c0_i32_1 = arith.constant 0 : i32
    return %arg1, %c0_i32, %c0_i32_0 : i32, i32, i32
  }
  func.func @transform_8(%arg0: i32, %arg1: i32) -> (i32, i32, i32) {
    %c0_i32 = arith.constant 0 : i32
    %c0_i32_0 = arith.constant 0 : i32
    %c0_i32_1 = arith.constant 0 : i32
    return %arg1, %c0_i32, %c0_i32_0 : i32, i32, i32
  }
  func.func @transform_9(%arg0: i32, %arg1: i32) -> (i32, i32, i32) {
    %c0_i32 = arith.constant 0 : i32
    %c0_i32_0 = arith.constant 0 : i32
    %c0_i32_1 = arith.constant 0 : i32
    return %arg1, %c0_i32, %c0_i32_0 : i32, i32, i32
  }
  func.func @transform_10(%arg0: i32, %arg1: i32) -> (i32, i32, i32) {
    %c0_i32 = arith.constant 0 : i32
    %c0_i32_0 = arith.constant 0 : i32
    %c0_i32_1 = arith.constant 0 : i32
    return %arg1, %c0_i32, %c0_i32_0 : i32, i32, i32
  }
  func.func @transform_11(%arg0: i32, %arg1: i32) -> (i32, i32, i32) {
    %c0_i32 = arith.constant 0 : i32
    %c0_i32_0 = arith.constant 0 : i32
    %c0_i32_1 = arith.constant 0 : i32
    return %arg1, %c0_i32, %c0_i32_0 : i32, i32, i32
  }
  func.func @transform_12(%arg0: i32, %arg1: i32) -> (i32, i32, i32) {
    %c0_i32 = arith.constant 0 : i32
    %c0_i32_0 = arith.constant 0 : i32
    %c0_i32_1 = arith.constant 0 : i32
    return %arg1, %c0_i32, %c0_i32_0 : i32, i32, i32
  }
  func.func @transform_13(%arg0: i32, %arg1: i32) -> (i32, i32, i32) {
    %c0_i32 = arith.constant 0 : i32
    %c0_i32_0 = arith.constant 0 : i32
    %c0_i32_1 = arith.constant 0 : i32
    return %arg0, %c0_i32, %c0_i32_0 : i32, i32, i32
  }
}

module attributes {stable_mosaic.version = 11 : i64} {
  func.func @_head_kernel(%arg0: memref<2x64xf32, #tpu.memory_space<vmem>>, %arg1: memref<1x64xf32, #tpu.memory_space<vmem>>, %arg2: memref<1x64xf32, #tpu.memory_space<vmem>>, %arg3: memref<64x128xbf16, #tpu.memory_space<vmem>>, %arg4: memref<1x128xf32, #tpu.memory_space<vmem>>, %arg5: memref<2x128xf32, #tpu.memory_space<vmem>>) attributes {dimension_semantics = [], scalar_prefetch = 0 : i64, scratch_operands = 0 : i64, tpu.core_type = #tpu.core_type<tc>} {
    %c0 = arith.constant 0 : index
    %c0_0 = arith.constant 0 : index
    %0 = vector.load %arg0[%c0, %c0_0] : memref<2x64xf32, #tpu.memory_space<vmem>>, vector<2x64xf32>
    %c0_1 = arith.constant 0 : index
    %c0_2 = arith.constant 0 : index
    %1 = vector.load %arg1[%c0_1, %c0_2] : memref<1x64xf32, #tpu.memory_space<vmem>>, vector<1x64xf32>
    %c0_3 = arith.constant 0 : index
    %c0_4 = arith.constant 0 : index
    %2 = vector.load %arg2[%c0_3, %c0_4] : memref<1x64xf32, #tpu.memory_space<vmem>>, vector<1x64xf32>
    %cst = arith.constant dense<0.000000e+00> : vector<2xf32>
    %3 = vector.multi_reduction <add>, %0, %cst [1] : vector<2x64xf32> to vector<2xf32>
    %4 = vector.shape_cast %3 : vector<2xf32> to vector<2x1xf32>
    %cst_5 = arith.constant 6.400000e+01 : f32
    %5 = vector.broadcast %cst_5 : f32 to vector<2x1xf32>
    %6 = arith.divf %4, %5 : vector<2x1xf32>
    %7 = vector.broadcast %6 : vector<2x1xf32> to vector<2x64xf32>
    %8 = arith.subf %0, %7 : vector<2x64xf32>
    %9 = arith.mulf %8, %8 : vector<2x64xf32>
    %cst_6 = arith.constant dense<0.000000e+00> : vector<2xf32>
    %10 = vector.multi_reduction <add>, %9, %cst_6 [1] : vector<2x64xf32> to vector<2xf32>
    %11 = vector.shape_cast %10 : vector<2xf32> to vector<2x1xf32>
    %cst_7 = arith.constant 6.400000e+01 : f32
    %12 = vector.broadcast %cst_7 : f32 to vector<2x1xf32>
    %13 = arith.divf %11, %12 : vector<2x1xf32>
    %14 = vector.broadcast %6 : vector<2x1xf32> to vector<2x64xf32>
    %15 = arith.subf %0, %14 : vector<2x64xf32>
    %cst_8 = arith.constant 9.99999997E-7 : f32
    %16 = vector.broadcast %cst_8 : f32 to vector<2x1xf32>
    %17 = arith.addf %13, %16 : vector<2x1xf32>
    %18 = math.rsqrt %17 : vector<2x1xf32>
    %19 = vector.broadcast %18 : vector<2x1xf32> to vector<2x64xf32>
    %20 = arith.mulf %15, %19 : vector<2x64xf32>
    %21 = vector.broadcast %1 : vector<1x64xf32> to vector<2x64xf32>
    %22 = arith.mulf %20, %21 : vector<2x64xf32>
    %23 = vector.broadcast %2 : vector<1x64xf32> to vector<2x64xf32>
    %24 = arith.addf %22, %23 : vector<2x64xf32>
    %25 = arith.truncf %24 : vector<2x64xf32> to vector<2x64xbf16>
    %c0_9 = arith.constant 0 : index
    %c0_10 = arith.constant 0 : index
    %26 = vector.load %arg3[%c0_9, %c0_10] : memref<64x128xbf16, #tpu.memory_space<vmem>>, vector<64x128xbf16>
    %cst_11 = arith.constant dense<0.000000e+00> : vector<2x128xf32>
    %27 = tpu.matmul %25, %26, %cst_11 {dimension_numbers = #tpu.dot_dimension_numbers<[1], [0], [0], [1], [0, 0, 1, 1], [], []>} : vector<2x64xbf16>, vector<64x128xbf16>, vector<2x128xf32> -> vector<2x128xf32>
    %c0_12 = arith.constant 0 : index
    %c0_13 = arith.constant 0 : index
    %28 = vector.load %arg4[%c0_12, %c0_13] : memref<1x128xf32, #tpu.memory_space<vmem>>, vector<1x128xf32>
    %29 = vector.broadcast %28 : vector<1x128xf32> to vector<2x128xf32>
    %30 = arith.addf %27, %29 : vector<2x128xf32>
    %c0_14 = arith.constant 0 : index
    %c0_15 = arith.constant 0 : index
    %31 = vector.load %arg5[%c0_14, %c0_15] : memref<2x128xf32, #tpu.memory_space<vmem>>, vector<2x128xf32>
    tpu.vector_store %arg5[%c0_14, %c0_15], %30 {strides = array<i32>} : memref<2x128xf32, #tpu.memory_space<vmem>>, vector<2x128xf32>,
    return
  }
}

</mosaic_0001>

<llo_original>
// kernel: vit_forward.5
$region0: #{vit_forward.5}
  #allocation0 [shape = 'u32[]', space=smem, size = 0x4, offset = 0x4, fixed_abs, tag = 'smem constant byte address 0x4 - core index']
  #allocation1 [shape = 'u32[144,128]{1,0:T(1,128)}', space=vmem, size = 0x12000, scoped, tag = 'internal scratch']
  %s0 = inlined_call_operand.vmem [shape: f32[2,64], index: 0, kind: input, shape index: {}]
  %s1 = inlined_call_operand.vmem [shape: f32[1,64], index: 1, kind: input, shape index: {}]
  %s2 = inlined_call_operand.vmem [shape: f32[1,64], index: 2, kind: input, shape index: {}]
  %s3 = inlined_call_operand.vmem [shape: bf16[64,128], index: 3, kind: input, shape index: {}]
  %s4 = inlined_call_operand.vmem [shape: f32[1,128], index: 4, kind: input, shape index: {}]
  %s5 = inlined_call_operand.hbm [shape: f32[2,128], index: 5, kind: output, shape index: {}]
  %s6 = sld [smem:[#allocation0]]
  $region30: #{vit_forward.5} parent=0
    _
  %s8 = ssub.s32 1, %s6
  %s9 = scalar_select 0, %s8, %s6
  $region1: #{vit_forward.5} parent=0
    #allocation2 [shape = 'u8[1024]{0}', space=vmem, size = 0x400, scoped, tag = 'output window, operand 0, single buffered']
    #allocation3 [shape = 's32[1]{0}', space=sflag, size = 0x4, scoped, tag = 'scoped memory for vit_forward.5']
    %10 = vsyncpa [#allocation3], 0
    // Predicated region
    $region2: #{vit_forward.5} parent=1 // pred_check
      _
    $region3: #{vit_forward.5} parent=1 // pred_check_branch
      %12 = sbr.rel (0) target = $region5
    $region4: #{vit_forward.5} parent=1 // pred_region
      _
    $region5: #{vit_forward.5} parent=1 // pred_fallthru
      _
    // Predicated region
    $region6: #{vit_forward.5} parent=1 // pred_check
      _
    $region7: #{vit_forward.5} parent=1 // pred_check_branch
      %14 = sbr.rel (0) target = $region9
    $region8: #{vit_forward.5} parent=1 // pred_region
      _
    $region9: #{vit_forward.5} parent=1 // pred_fallthru
      _
    // Predicated region
    $region10: #{vit_forward.5} parent=1 // pred_check
      _
    $region11: #{vit_forward.5} parent=1 // pred_check_branch
      %16 = sbr.rel (0) target = $region13
    $region12: #{vit_forward.5} parent=1 // pred_region
      _
    $region13: #{vit_forward.5} parent=1 // pred_fallthru
      _
    // Predicated region
    $region14: #{vit_forward.5} parent=1 // pred_check
      _
    $region15: #{vit_forward.5} parent=1 // pred_check_branch
      %18 = sbr.rel (0) target = $region17
    $region16: #{vit_forward.5} parent=1 // pred_region
      _
    $region17: #{vit_forward.5} parent=1 // pred_fallthru
      _
    // Predicated region
    $region18: #{vit_forward.5} parent=1 // pred_check
      _
    $region19: #{vit_forward.5} parent=1 // pred_check_branch
      %20 = sbr.rel (0) target = $region21
    $region20: #{vit_forward.5} parent=1 // pred_region
      _
    $region21: #{vit_forward.5} parent=1 // pred_fallthru
      _
    %v22 = vld [vmem:[%s0] sm:$0x3]
    %v23 = vld [vmem:[%s1] sm:$0x1]
    %v24 = vld [vmem:[%s2] sm:$0x1]
    %vm25 = vcmask 517120
    %v26 = vsel %vm25, %v22, 0.0
    %27 = vadd.xlane.f32.xlu0 %v26
    %v28 = vpop.xlane.xlu0 %27
    %v29 = vrcp.pop 64.0
    %v30 = vmul.f32 %v28, %v29
    %v31 = vsub.f32 %v22, %v30
    %v32 = vmul.f32 %v31, %v31
    %v33 = vsel %vm25, %v32, 0.0
    %34 = vadd.xlane.f32.xlu0 %v33
    %v35 = vpop.xlane.xlu0 %34
    %v36 = vmul.f32 %v35, %v29
    %v37 = vadd.f32 %v36, 1e-06
    %v38 = vrsqrt.pop %v37
    %v39 = vmul.f32 %v31, %v38
    %v41 = vlaneseq
    %v42 = vshrl.u32 %v41, 7
    %v43 = vsub.s32 0, %v42
    %v44 = vrot.slane %v23, %v43
    %v46 = vmul.f32 %v39, %v44
    %v48 = vlaneseq
    %v49 = vshrl.u32 %v48, 7
    %v50 = vsub.s32 0, %v49
    %v51 = vrot.slane %v24, %v50
    %v53 = vadd.f32 %v46, %v51
    %v54 = vpack.c.bf16 %v53, %v53
    %v55 = vld [vmem:[%s3] sm:$0xf]
    %v56 = vld [vmem:[%s3 + $0x4] sm:$0xf]
    %v57 = vld [vmem:[%s3 + $0x8] sm:$0xf]
    %v58 = vld [vmem:[%s3 + $0xc] sm:$0xf]
    %v59 = vld [vmem:[%s3 + $0x10] sm:$0xf]
    %v60 = vld [vmem:[%s3 + $0x14] sm:$0xf]
    %v61 = vld [vmem:[%s3 + $0x18] sm:$0xf]
    %v62 = vld [vmem:[%s3 + $0x1c] sm:$0xf]
    %v63 = vld [vmem:[%s4] sm:$0x1]
    %v65 = vlaneseq
    %v66 = vshrl.u32 %v65, 7
    %v67 = vsub.s32 0, %v66
    %v68 = vrot.slane %v63, %v67
    %v78 = vunpack.c.l.b16 %v55
    %v79 = vunpack.c.l.b16 %v56
    %v80 = vunpack.c.l.b16 %v57
    %v81 = vunpack.c.l.b16 %v58
    %v82 = vunpack.c.l.b16 %v59
    %v83 = vunpack.c.l.b16 %v60
    %v84 = vunpack.c.l.b16 %v61
    %v85 = vunpack.c.l.b16 %v62
    %v86 = vpack.c.b16 %v79, %v78
    %v87 = vpack.c.b16 %v81, %v80
    %v88 = vpack.c.b16 %v83, %v82
    %v89 = vpack.c.b16 %v85, %v84
    %vm94 = vcmask 523264
    %v96 = vsel %vm94, %v54, 0
    %98 = vmatprep.subr.bf16.mxu0 0
    %99 = vmatpush1.bf16.msra.mxu0 %v86
    %100 = vmatprep.subr.bf16.mxu0 0
    %101 = vmatpush1.bf16.msra.mxu0 %v87
    %102 = vmatprep.subr.bf16.mxu0 0
    %103 = vmatpush1.bf16.msra.mxu0 %v88
    %104 = vmatprep.subr.bf16.mxu0 0
    %105 = vmatpush1.bf16.msra.mxu0 %v89
    %106 = vmatprep.subr.bf16.mxu0 0
    %107 = vmatpush1.bf16.msra.mxu0 0
    %108 = vmatprep.subr.bf16.mxu0 0
    %109 = vmatpush1.bf16.msra.mxu0 0
    %110 = vmatprep.subr.bf16.mxu0 0
    %111 = vmatpush1.bf16.msra.mxu0 0
    %112 = vmatprep.subr.bf16.mxu0 0
    %113 = vmatpush1.bf16.msra.mxu0 0
    %114 = vmatprep.subr.bf16.mxu0 0
    %115 = vmatpush1.bf16.msra.mxu0 0
    %116 = vmatprep.subr.bf16.mxu0 0
    %117 = vmatpush1.bf16.msra.mxu0 0
    %118 = vmatprep.subr.bf16.mxu0 0
    %119 = vmatpush1.bf16.msra.mxu0 0
    %120 = vmatprep.subr.bf16.mxu0 0
    %121 = vmatpush1.bf16.msra.mxu0 0
    %122 = vmatprep.subr.bf16.mxu0 0
    %123 = vmatpush1.bf16.msra.mxu0 0
    %124 = vmatprep.subr.bf16.mxu0 0
    %125 = vmatpush1.bf16.msra.mxu0 0
    %126 = vmatprep.subr.bf16.mxu0 0
    %127 = vmatpush1.bf16.msra.mxu0 0
    %128 = vmatprep.subr.bf16.mxu0 0
    %129 = vmatpush1.bf16.msra.mxu0 0
    %130 = vmatprep.mubr.bf16.mxu0 0
    %131 = vmatmul.mubr.bf16.gmra.mrb[0].mxu0 %v96
    %v132 = vpop.f32.mrb[0].mxu0
    %v133 = vadd.f32 %v68, %v132
    %v134 = vpop.f32.mrb[0].mxu0
    %v135 = vpop.f32.mrb[0].mxu0
    %v136 = vpop.f32.mrb[0].mxu0
    %137 = vdwg.mxu0
    %138 = vst [vmem:[#allocation2] sm:$0x3] %v133
    // Predicated region
    $region22: #{vit_forward.5} parent=1 // pred_check
      _
    $region23: #{vit_forward.5} parent=1 // pred_check_branch
      %140 = sbr.rel (0) target = $region25
    $region24: #{vit_forward.5} parent=1 // pred_region
      %s142 = ssub.s32 32, 32
      %143 = vsyncadd [#allocation3], %s142
      %s145 = sshll.u32 [#allocation2], 4
      %s146 = int_to_ptr.vmem [resolvable:$true] %s145
      %148 = dma.vmem_to_hbm [thread:$0]  %s146, 32, %s5, [#allocation3]
    $region25: #{vit_forward.5} parent=1 // pred_fallthru
      _
    // Predicated region
    $region26: #{vit_forward.5} parent=1 // pred_check
      _
    $region27: #{vit_forward.5} parent=1 // pred_check_branch
      %150 = sbr.rel (0) target = $region29
    $region28: #{vit_forward.5} parent=1 // pred_region
      %151 = dma.done [#allocation3], 32
    $region29: #{vit_forward.5} parent=1 // pred_fallthru
      _
    %152 = vsyncpa [#allocation3], 1

// kernel: vit_forward.3
$region0: #{vit_forward.3}
  #allocation0 [shape = 'u32[]', space=smem, size = 0x4, offset = 0x4, fixed_abs, tag = 'smem constant byte address 0x4 - core index']
  #allocation1 [shape = 'u32[144,128]{1,0:T(1,128)}', space=vmem, size = 0x12000, scoped, tag = 'internal scratch']
  %s0 = inlined_call_operand.vmem [shape: bf16[8,768], index: 0, kind: input, shape index: {}]
  %s1 = inlined_call_operand.vmem [shape: bf16[768,64], index: 1, kind: input, shape index: {}]
  %s2 = inlined_call_operand.vmem [shape: f32[1,64], index: 2, kind: input, shape index: {}]
  %s3 = inlined_call_operand.vmem [shape: f32[8,64], index: 3, kind: output, shape index: {}]
  %s4 = sld [smem:[#allocation0]]
  $region22: #{vit_forward.3} parent=0
    _
  %s6 = ssub.s32 1, %s4
  %s7 = scalar_select 0, %s6, %s4
  // Predicated region
  $region2: #{vit_forward.3} parent=0 // pred_check
    _
  $region3: #{vit_forward.3} parent=0 // pred_check_branch
    %9 = sbr.rel (0) target = $region5
  $region4: #{vit_forward.3} parent=0 // pred_region
    _
  $region5: #{vit_forward.3} parent=0 // pred_fallthru
    _
  // Predicated region
  $region6: #{vit_forward.3} parent=0 // pred_check
    _
  $region7: #{vit_forward.3} parent=0 // pred_check_branch
    %11 = sbr.rel (0) target = $region9
  $region8: #{vit_forward.3} parent=0 // pred_region
    _
  $region9: #{vit_forward.3} parent=0 // pred_fallthru
    _
  // Predicated region
  $region10: #{vit_forward.3} parent=0 // pred_check
    _
  $region11: #{vit_forward.3} parent=0 // pred_check_branch
    %13 = sbr.rel (0) target = $region13
  $region12: #{vit_forward.3} parent=0 // pred_region
    _
  $region13: #{vit_forward.3} parent=0 // pred_fallthru
    _
  %v15 = vld [vmem:[%s0] sm:$0xff]
  %v16 = vld [vmem:[%s0 + $0x8] sm:$0xff]
  %v17 = vld [vmem:[%s0 + $0x10] sm:$0xff]
  %v18 = vld [vmem:[%s1] sm:$0xf]
  %v19 = vld [vmem:[%s1 + $0x4] sm:$0xf]
  %v20 = vld [vmem:[%s1 + $0x8] sm:$0xf]
  %v21 = vld [vmem:[%s1 + $0xc] sm:$0xf]
  %v22 = vld [vmem:[%s1 + $0x10] sm:$0xf]
  %v23 = vld [vmem:[%s1 + $0x14] sm:$0xf]
  %v24 = vld [vmem:[%s1 + $0x18] sm:$0xf]
  %v25 = vld [vmem:[%s1 + $0x1c] sm:$0xf]
  %v26 = vld [vmem:[%s1 + $0x20] sm:$0xf]
  %v27 = vld [vmem:[%s1 + $0x24] sm:$0xf]
  %v28 = vld [vmem:[%s1 + $0x28] sm:$0xf]
  %v29 = vld [vmem:[%s1 + $0x2c] sm:$0xf]
  %v30 = vld [vmem:[%s1 + $0x30] sm:$0xf]
  %v31 = vld [vmem:[%s1 + $0x34] sm:$0xf]
  %v32 = vld [vmem:[%s1 + $0x38] sm:$0xf]
  %v33 = vld [vmem:[%s1 + $0x3c] sm:$0xf]
  %v34 = vld [vmem:[%s1 + $0x40] sm:$0xf]
  %v35 = vld [vmem:[%s1 + $0x44] sm:$0xf]
  %v36 = vld [vmem:[%s1 + $0x48] sm:$0xf]
  %v37 = vld [vmem:[%s1 + $0x4c] sm:$0xf]
  %v38 = vld [vmem:[%s1 + $0x50] sm:$0xf]
  %v39 = vld [vmem:[%s1 + $0x54] sm:$0xf]
  %v40 = vld [vmem:[%s1 + $0x58] sm:$0xf]
  %v41 = vld [vmem:[%s1 + $0x5c] sm:$0xf]
  %v42 = vld [vmem:[%s1 + $0x60] sm:$0xf]
  %v43 = vld [vmem:[%s1 + $0x64] sm:$0xf]
  %v44 = vld [vmem:[%s1 + $0x68] sm:$0xf]
  %v45 = vld [vmem:[%s1 + $0x6c] sm:$0xf]
  %v46 = vld [vmem:[%s1 + $0x70] sm:$0xf]
  %v47 = vld [vmem:[%s1 + $0x74] sm:$0xf]
  %v48 = vld [vmem:[%s1 + $0x78] sm:$0xf]
  %v49 = vld [vmem:[%s1 + $0x7c] sm:$0xf]
  %v50 = vld [vmem:[%s1 + $0x80] sm:$0xf]
  %v51 = vld [vmem:[%s1 + $0x84] sm:$0xf]
  %v52 = vld [vmem:[%s1 + $0x88] sm:$0xf]
  %v53 = vld [vmem:[%s1 + $0x8c] sm:$0xf]
  %v54 = vld [vmem:[%s1 + $0x90] sm:$0xf]
  %v55 = vld [vmem:[%s1 + $0x94] sm:$0xf]
  %v56 = vld [vmem:[%s1 + $0x98] sm:$0xf]
  %v57 = vld [vmem:[%s1 + $0x9c] sm:$0xf]
  %v58 = vld [vmem:[%s1 + $0xa0] sm:$0xf]
  %v59 = vld [vmem:[%s1 + $0xa4] sm:$0xf]
  %v60 = vld [vmem:[%s1 + $0xa8] sm:$0xf]
  %v61 = vld [vmem:[%s1 + $0xac] sm:$0xf]
  %v62 = vld [vmem:[%s1 + $0xb0] sm:$0xf]
  %v63 = vld [vmem:[%s1 + $0xb4] sm:$0xf]
  %v64 = vld [vmem:[%s1 + $0xb8] sm:$0xf]
  %v65 = vld [vmem:[%s1 + $0xbc] sm:$0xf]
  %v66 = vld [vmem:[%s1 + $0xc0] sm:$0xf]
  %v67 = vld [vmem:[%s1 + $0xc4] sm:$0xf]
  %v68 = vld [vmem:[%s1 + $0xc8] sm:$0xf]
  %v69 = vld [vmem:[%s1 + $0xcc] sm:$0xf]
  %v70 = vld [vmem:[%s1 + $0xd0] sm:$0xf]
  %v71 = vld [vmem:[%s1 + $0xd4] sm:$0xf]
  %v72 = vld [vmem:[%s1 + $0xd8] sm:$0xf]
  %v73 = vld [vmem:[%s1 + $0xdc] sm:$0xf]
  %v74 = vld [vmem:[%s1 + $0xe0] sm:$0xf]
  %v75 = vld [vmem:[%s1 + $0xe4] sm:$0xf]
  %v76 = vld [vmem:[%s1 + $0xe8] sm:$0xf]
  %v77 = vld [vmem:[%s1 + $0xec] sm:$0xf]
  %v78 = vld [vmem:[%s1 + $0xf0] sm:$0xf]
  %v79 = vld [vmem:[%s1 + $0xf4] sm:$0xf]
  %v80 = vld [vmem:[%s1 + $0xf8] sm:$0xf]
  %v81 = vld [vmem:[%s1 + $0xfc] sm:$0xf]
  %v82 = vld [vmem:[%s1 + $0x100] sm:$0xf]
  %v83 = vld [vmem:[%s1 + $0x104] sm:$0xf]
  %v84 = vld [vmem:[%s1 + $0x108] sm:$0xf]
  %v85 = vld [vmem:[%s1 + $0x10c] sm:$0xf]
  %v86 = vld [vmem:[%s1 + $0x110] sm:$0xf]
  %v87 = vld [vmem:[%s1 + $0x114] sm:$0xf]
  %v88 = vld [vmem:[%s1 + $0x118] sm:$0xf]
  %v89 = vld [vmem:[%s1 + $0x11c] sm:$0xf]
  %v90 = vld [vmem:[%s1 + $0x120] sm:$0xf]
  %v91 = vld [vmem:[%s1 + $0x124] sm:$0xf]
  %v92 = vld [vmem:[%s1 + $0x128] sm:$0xf]
  %v93 = vld [vmem:[%s1 + $0x12c] sm:$0xf]
  %v94 = vld [vmem:[%s1 + $0x130] sm:$0xf]
  %v95 = vld [vmem:[%s1 + $0x134] sm:$0xf]
  %v96 = vld [vmem:[%s1 + $0x138] sm:$0xf]
  %v97 = vld [vmem:[%s1 + $0x13c] sm:$0xf]
  %v98 = vld [vmem:[%s1 + $0x140] sm:$0xf]
  %v99 = vld [vmem:[%s1 + $0x144] sm:$0xf]
  %v100 = vld [vmem:[%s1 + $0x148] sm:$0xf]
  %v101 = vld [vmem:[%s1 + $0x14c] sm:$0xf]
  %v102 = vld [vmem:[%s1 + $0x150] sm:$0xf]
  %v103 = vld [vmem:[%s1 + $0x154] sm:$0xf]
  %v104 = vld [vmem:[%s1 + $0x158] sm:$0xf]
  %v105 = vld [vmem:[%s1 + $0x15c] sm:$0xf]
  %v106 = vld [vmem:[%s1 + $0x160] sm:$0xf]
  %v107 = vld [vmem:[%s1 + $0x164] sm:$0xf]
  %v108 = vld [vmem:[%s1 + $0x168] sm:$0xf]
  %v109 = vld [vmem:[%s1 + $0x16c] sm:$0xf]
  %v110 = vld [vmem:[%s1 + $0x170] sm:$0xf]
  %v111 = vld [vmem:[%s1 + $0x174] sm:$0xf]
  %v112 = vld [vmem:[%s1 + $0x178] sm:$0xf]
  %v113 = vld [vmem:[%s1 + $0x17c] sm:$0xf]
  %v114 = vld [vmem:[%s2] sm:$0x1]
  %v116 = vlaneseq
  %v117 = vshrl.u32 %v116, 7
  %v118 = vsub.s32 0, %v117
  %v119 = vrot.slane %v114, %v118
  %v124 = vunpack.c.l.b16 %v15
  %v125 = vunpack.c.h.b16 %v15
  %v126 = vunpack.c.l.b16 %v16
  %v127 = vunpack.c.h.b16 %v16
  %v128 = vunpack.c.l.b16 %v17
  %v129 = vunpack.c.h.b16 %v17
  %v130 = vpack.c.b16 %v124, %v124
  %v131 = vpack.c.b16 %v125, %v125
  %v132 = vpack.c.b16 %v126, %v126
  %v133 = vpack.c.b16 %v127, %v127
  %v134 = vpack.c.b16 %v128, %v128
  %v135 = vpack.c.b16 %v129, %v129
  %v238 = vunpack.c.l.b16 %v18
  %v239 = vunpack.c.l.b16 %v19
  %v240 = vunpack.c.l.b16 %v20
  %v241 = vunpack.c.l.b16 %v21
  %v242 = vunpack.c.l.b16 %v22
  %v243 = vunpack.c.l.b16 %v23
  %v244 = vunpack.c.l.b16 %v24
  %v245 = vunpack.c.l.b16 %v25
  %v246 = vunpack.c.l.b16 %v26
  %v247 = vunpack.c.l.b16 %v27
  %v248 = vunpack.c.l.b16 %v28
  %v249 = vunpack.c.l.b16 %v29
  %v250 = vunpack.c.l.b16 %v30
  %v251 = vunpack.c.l.b16 %v31
  %v252 = vunpack.c.l.b16 %v32
  %v253 = vunpack.c.l.b16 %v33
  %v254 = vunpack.c.l.b16 %v34
  %v255 = vunpack.c.l.b16 %v35
  %v256 = vunpack.c.l.b16 %v36
  %v257 = vunpack.c.l.b16 %v37
  %v258 = vunpack.c.l.b16 %v38
  %v259 = vunpack.c.l.b16 %v39
  %v260 = vunpack.c.l.b16 %v40
  %v261 = vunpack.c.l.b16 %v41
  %v262 = vunpack.c.l.b16 %v42
  %v263 = vunpack.c.l.b16 %v43
  %v264 = vunpack.c.l.b16 %v44
  %v265 = vunpack.c.l.b16 %v45
  %v266 = vunpack.c.l.b16 %v46
  %v267 = vunpack.c.l.b16 %v47
  %v268 = vunpack.c.l.b16 %v48
  %v269 = vunpack.c.l.b16 %v49
  %v270 = vunpack.c.l.b16 %v50
  %v271 = vunpack.c.l.b16 %v51
  %v272 = vunpack.c.l.b16 %v52
  %v273 = vunpack.c.l.b16 %v53
  %v274 = vunpack.c.l.b16 %v54
  %v275 = vunpack.c.l.b16 %v55
  %v276 = vunpack.c.l.b16 %v56
  %v277 = vunpack.c.l.b16 %v57
  %v278 = vunpack.c.l.b16 %v58
  %v279 = vunpack.c.l.b16 %v59
  %v280 = vunpack.c.l.b16 %v60
  %v281 = vunpack.c.l.b16 %v61
  %v282 = vunpack.c.l.b16 %v62
  %v283 = vunpack.c.l.b16 %v63
  %v284 = vunpack.c.l.b16 %v64
  %v285 = vunpack.c.l.b16 %v65
  %v286 = vunpack.c.l.b16 %v66
  %v287 = vunpack.c.l.b16 %v67
  %v288 = vunpack.c.l.b16 %v68
  %v289 = vunpack.c.l.b16 %v69
  %v290 = vunpack.c.l.b16 %v70
  %v291 = vunpack.c.l.b16 %v71
  %v292 = vunpack.c.l.b16 %v72
  %v293 = vunpack.c.l.b16 %v73
  %v294 = vunpack.c.l.b16 %v74
  %v295 = vunpack.c.l.b16 %v75
  %v296 = vunpack.c.l.b16 %v76
  %v297 = vunpack.c.l.b16 %v77
  %v298 = vunpack.c.l.b16 %v78
  %v299 = vunpack.c.l.b16 %v79
  %v300 = vunpack.c.l.b16 %v80
  %v301 = vunpack.c.l.b16 %v81
  %v302 = vunpack.c.l.b16 %v82
  %v303 = vunpack.c.l.b16 %v83
  %v304 = vunpack.c.l.b16 %v84
  %v305 = vunpack.c.l.b16 %v85
  %v306 = vunpack.c.l.b16 %v86
  %v307 = vunpack.c.l.b16 %v87
  %v308 = vunpack.c.l.b16 %v88
  %v309 = vunpack.c.l.b16 %v89
  %v310 = vunpack.c.l.b16 %v90
  %v311 = vunpack.c.l.b16 %v91
  %v312 = vunpack.c.l.b16 %v92
  %v313 = vunpack.c.l.b16 %v93
  %v314 = vunpack.c.l.b16 %v94
  %v315 = vunpack.c.l.b16 %v95
  %v316 = vunpack.c.l.b16 %v96
  %v317 = vunpack.c.l.b16 %v97
  %v318 = vunpack.c.l.b16 %v98
  %v319 = vunpack.c.l.b16 %v99
  %v320 = vunpack.c.l.b16 %v100
  %v321 = vunpack.c.l.b16 %v101
  %v322 = vunpack.c.l.b16 %v102
  %v323 = vunpack.c.l.b16 %v103
  %v324 = vunpack.c.l.b16 %v104
  %v325 = vunpack.c.l.b16 %v105
  %v326 = vunpack.c.l.b16 %v106
  %v327 = vunpack.c.l.b16 %v107
  %v328 = vunpack.c.l.b16 %v108
  %v329 = vunpack.c.l.b16 %v109
  %v330 = vunpack.c.l.b16 %v110
  %v331 = vunpack.c.l.b16 %v111
  %v332 = vunpack.c.l.b16 %v112
  %v333 = vunpack.c.l.b16 %v113
  %v334 = vpack.c.b16 %v239, %v238
  %v335 = vpack.c.b16 %v241, %v240
  %v336 = vpack.c.b16 %v243, %v242
  %v337 = vpack.c.b16 %v245, %v244
  %v338 = vpack.c.b16 %v247, %v246
  %v339 = vpack.c.b16 %v249, %v248
  %v340 = vpack.c.b16 %v251, %v250
  %v341 = vpack.c.b16 %v253, %v252
  %v342 = vpack.c.b16 %v255, %v254
  %v343 = vpack.c.b16 %v257, %v256
  %v344 = vpack.c.b16 %v259, %v258
  %v345 = vpack.c.b16 %v261, %v260
  %v346 = vpack.c.b16 %v263, %v262
  %v347 = vpack.c.b16 %v265, %v264
  %v348 = vpack.c.b16 %v267, %v266
  %v349 = vpack.c.b16 %v269, %v268
  %v350 = vpack.c.b16 %v271, %v270
  %v351 = vpack.c.b16 %v273, %v272
  %v352 = vpack.c.b16 %v275, %v274
  %v353 = vpack.c.b16 %v277, %v276
  %v354 = vpack.c.b16 %v279, %v278
  %v355 = vpack.c.b16 %v281, %v280
  %v356 = vpack.c.b16 %v283, %v282
  %v357 = vpack.c.b16 %v285, %v284
  %v358 = vpack.c.b16 %v287, %v286
  %v359 = vpack.c.b16 %v289, %v288
  %v360 = vpack.c.b16 %v291, %v290
  %v361 = vpack.c.b16 %v293, %v292
  %v362 = vpack.c.b16 %v295, %v294
  %v363 = vpack.c.b16 %v297, %v296
  %v364 = vpack.c.b16 %v299, %v298
  %v365 = vpack.c.b16 %v301, %v300
  %v366 = vpack.c.b16 %v303, %v302
  %v367 = vpack.c.b16 %v305, %v304
  %v368 = vpack.c.b16 %v307, %v306
  %v369 = vpack.c.b16 %v309, %v308
  %v370 = vpack.c.b16 %v311, %v310
  %v371 = vpack.c.b16 %v313, %v312
  %v372 = vpack.c.b16 %v315, %v314
  %v373 = vpack.c.b16 %v317, %v316
  %v374 = vpack.c.b16 %v319, %v318
  %v375 = vpack.c.b16 %v321, %v320
  %v376 = vpack.c.b16 %v323, %v322
  %v377 = vpack.c.b16 %v325, %v324
  %v378 = vpack.c.b16 %v327, %v326
  %v379 = vpack.c.b16 %v329, %v328
  %v380 = vpack.c.b16 %v331, %v330
  %v381 = vpack.c.b16 %v333, %v332
  %430 = vmatprep.subr.bf16.mxu0 0
  %431 = vmatpush1.bf16.msra.mxu0 %v334
  %432 = vmatprep.subr.bf16.mxu0 0
  %433 = vmatpush1.bf16.msra.mxu0 %v335
  %434 = vmatprep.subr.bf16.mxu0 0
  %435 = vmatpush1.bf16.msra.mxu0 %v336
  %436 = vmatprep.subr.bf16.mxu0 0
  %437 = vmatpush1.bf16.msra.mxu0 %v337
  %438 = vmatprep.subr.bf16.mxu0 0
  %439 = vmatpush1.bf16.msra.mxu0 %v338
  %440 = vmatprep.subr.bf16.mxu0 0
  %441 = vmatpush1.bf16.msra.mxu0 %v339
  %442 = vmatprep.subr.bf16.mxu0 0
  %443 = vmatpush1.bf16.msra.mxu0 %v340
  %444 = vmatprep.subr.bf16.mxu0 0
  %445 = vmatpush1.bf16.msra.mxu0 %v341
  %446 = vmatprep.subr.bf16.mxu0 0
  %447 = vmatpush1.bf16.msra.mxu0 %v342
  %448 = vmatprep.subr.bf16.mxu0 0
  %449 = vmatpush1.bf16.msra.mxu0 %v343
  %450 = vmatprep.subr.bf16.mxu0 0
  %451 = vmatpush1.bf16.msra.mxu0 %v344
  %452 = vmatprep.subr.bf16.mxu0 0
  %453 = vmatpush1.bf16.msra.mxu0 %v345
  %454 = vmatprep.subr.bf16.mxu0 0
  %455 = vmatpush1.bf16.msra.mxu0 %v346
  %456 = vmatprep.subr.bf16.mxu0 0
  %457 = vmatpush1.bf16.msra.mxu0 %v347
  %458 = vmatprep.subr.bf16.mxu0 0
  %459 = vmatpush1.bf16.msra.mxu0 %v348
  %460 = vmatprep.subr.bf16.mxu0 0
  %461 = vmatpush1.bf16.msra.mxu0 %v349
  %462 = vmatprep.mubr.bf16.mxu0 %v131
  %463 = vmatmul.mubr.bf16.gmra.mrb[0].mxu0 %v130
  %v464 = vpop.f32.mrb[0].mxu0
  %v465 = vadd.f32 %v119, %v464
  %v466 = vpop.f32.mrb[0].mxu0
  %v467 = vpop.f32.mrb[0].mxu0
  %v468 = vpop.f32.mrb[0].mxu0
  %469 = vdwg.mxu0
  %470 = vmatprep.subr.bf16.mxu0 0
  %471 = vmatpush1.bf16.msra.mxu0 %v350
  %472 = vmatprep.subr.bf16.mxu0 0
  %473 = vmatpush1.bf16.msra.mxu0 %v351
  %474 = vmatprep.subr.bf16.mxu0 0
  %475 = vmatpush1.bf16.msra.mxu0 %v352
  %476 = vmatprep.subr.bf16.mxu0 0
  %477 = vmatpush1.bf16.msra.mxu0 %v353
  %478 = vmatprep.subr.bf16.mxu0 0
  %479 = vmatpush1.bf16.msra.mxu0 %v354
  %480 = vmatprep.subr.bf16.mxu0 0
  %481 = vmatpush1.bf16.msra.mxu0 %v355
  %482 = vmatprep.subr.bf16.mxu0 0
  %483 = vmatpush1.bf16.msra.mxu0 %v356
  %484 = vmatprep.subr.bf16.mxu0 0
  %485 = vmatpush1.bf16.msra.mxu0 %v357
  %486 = vmatprep.subr.bf16.mxu0 0
  %487 = vmatpush1.bf16.msra.mxu0 %v358
  %488 = vmatprep.subr.bf16.mxu0 0
  %489 = vmatpush1.bf16.msra.mxu0 %v359
  %490 = vmatprep.subr.bf16.mxu0 0
  %491 = vmatpush1.bf16.msra.mxu0 %v360
  %492 = vmatprep.subr.bf16.mxu0 0
  %493 = vmatpush1.bf16.msra.mxu0 %v361
  %494 = vmatprep.subr.bf16.mxu0 0
  %495 = vmatpush1.bf16.msra.mxu0 %v362
  %496 = vmatprep.subr.bf16.mxu0 0
  %497 = vmatpush1.bf16.msra.mxu0 %v363
  %498 = vmatprep.subr.bf16.mxu0 0
  %499 = vmatpush1.bf16.msra.mxu0 %v364
  %500 = vmatprep.subr.bf16.mxu0 0
  %501 = vmatpush1.bf16.msra.mxu0 %v365
  %502 = vmatprep.mubr.bf16.mxu0 %v133
  %503 = vmatmul.mubr.bf16.gmra.mrb[0].mxu0 %v132
  %v504 = vpop.f32.mrb[0].mxu0
  %v505 = vadd.f32 %v465, %v504
  %v506 = vpop.f32.mrb[0].mxu0
  %v507 = vpop.f32.mrb[0].mxu0
  %v508 = vpop.f32.mrb[0].mxu0
  %509 = vdwg.mxu0
  %510 = vmatprep.subr.bf16.mxu0 0
  %511 = vmatpush1.bf16.msra.mxu0 %v366
  %512 = vmatprep.subr.bf16.mxu0 0
  %513 = vmatpush1.bf16.msra.mxu0 %v367
  %514 = vmatprep.subr.bf16.mxu0 0
  %515 = vmatpush1.bf16.msra.mxu0 %v368
  %516 = vmatprep.subr.bf16.mxu0 0
  %517 = vmatpush1.bf16.msra.mxu0 %v369
  %518 = vmatprep.subr.bf16.mxu0 0
  %519 = vmatpush1.bf16.msra.mxu0 %v370
  %520 = vmatprep.subr.bf16.mxu0 0
  %521 = vmatpush1.bf16.msra.mxu0 %v371
  %522 = vmatprep.subr.bf16.mxu0 0
  %523 = vmatpush1.bf16.msra.mxu0 %v372
  %524 = vmatprep.subr.bf16.mxu0 0
  %525 = vmatpush1.bf16.msra.mxu0 %v373
  %526 = vmatprep.subr.bf16.mxu0 0
  %527 = vmatpush1.bf16.msra.mxu0 %v374
  %528 = vmatprep.subr.bf16.mxu0 0
  %529 = vmatpush1.bf16.msra.mxu0 %v375
  %530 = vmatprep.subr.bf16.mxu0 0
  %531 = vmatpush1.bf16.msra.mxu0 %v376
  %532 = vmatprep.subr.bf16.mxu0 0
  %533 = vmatpush1.bf16.msra.mxu0 %v377
  %534 = vmatprep.subr.bf16.mxu0 0
  %535 = vmatpush1.bf16.msra.mxu0 %v378
  %536 = vmatprep.subr.bf16.mxu0 0
  %537 = vmatpush1.bf16.msra.mxu0 %v379
  %538 = vmatprep.subr.bf16.mxu0 0
  %539 = vmatpush1.bf16.msra.mxu0 %v380
  %540 = vmatprep.subr.bf16.mxu0 0
  %541 = vmatpush1.bf16.msra.mxu0 %v381
  %542 = vmatprep.mubr.bf16.mxu0 %v135
  %543 = vmatmul.mubr.bf16.gmra.mrb[0].mxu0 %v134
  %v544 = vpop.f32.mrb[0].mxu0
  %v545 = vadd.f32 %v505, %v544
  %v546 = vpop.f32.mrb[0].mxu0
  %v547 = vpop.f32.mrb[0].mxu0
  %v548 = vpop.f32.mrb[0].mxu0
  %549 = vdwg.mxu0
  %vm550 = vcmask 523264
  %551 = vst.msk [vmem:[%s3] sm:$0xff] %vm550, %v545
  // Predicated region
  $region14: #{vit_forward.3} parent=0 // pred_check
    _
  $region15: #{vit_forward.3} parent=0 // pred_check_branch
    %553 = sbr.rel (0) target = $region17
  $region16: #{vit_forward.3} parent=0 // pred_region
    _
  $region17: #{vit_forward.3} parent=0 // pred_fallthru
    _
  // Predicated region
  $region18: #{vit_forward.3} parent=0 // pred_check
    _
  $region19: #{vit_forward.3} parent=0 // pred_check_branch
    %555 = sbr.rel (0) target = $region21
  $region20: #{vit_forward.3} parent=0 // pred_region
    _
  $region21: #{vit_forward.3} parent=0 // pred_fallthru
    _

// kernel: vit_forward.4
$region0: #{vit_forward.4}
  #allocation0 [shape = 'u32[]', space=smem, size = 0x4, offset = 0x4, fixed_abs, tag = 'smem constant byte address 0x4 - core index']
  #allocation1 [shape = 'u32[144,128]{1,0:T(1,128)}', space=vmem, size = 0x12000, scoped, tag = 'internal scratch']
  #allocation2 [shape = 'bf16[5,64]{1,0:T(8,128)(2,1)}', space=vmem, size = 0x800, scoped, tag = 'scratch operand']
  %s0 = inlined_call_operand.vmem [shape: f32[2,5,64], index: 0, kind: input, shape index: {}]
  %s1 = inlined_call_operand.vmem [shape: f32[2,1,64], index: 1, kind: input, shape index: {}]
  %s2 = inlined_call_operand.vmem [shape: f32[2,1,64], index: 2, kind: input, shape index: {}]
  %s3 = inlined_call_operand.vmem [shape: bf16[2,64,192], index: 3, kind: input, shape index: {}]
  %s4 = inlined_call_operand.vmem [shape: f32[2,1,192], index: 4, kind: input, shape index: {}]
  %s5 = inlined_call_operand.vmem [shape: bf16[2,64,64], index: 5, kind: input, shape index: {}]
  %s6 = inlined_call_operand.vmem [shape: f32[2,1,64], index: 6, kind: input, shape index: {}]
  %s7 = inlined_call_operand.vmem [shape: f32[2,1,64], index: 7, kind: input, shape index: {}]
  %s8 = inlined_call_operand.vmem [shape: f32[2,1,64], index: 8, kind: input, shape index: {}]
  %s9 = inlined_call_operand.vmem [shape: bf16[2,64,128], index: 9, kind: input, shape index: {}]
  %s10 = inlined_call_operand.vmem [shape: f32[2,1,128], index: 10, kind: input, shape index: {}]
  %s11 = inlined_call_operand.vmem [shape: bf16[2,128,64], index: 11, kind: input, shape index: {}]
  %s12 = inlined_call_operand.vmem [shape: f32[2,1,64], index: 12, kind: input, shape index: {}]
  %s13 = inlined_call_operand.vmem [shape: f32[2,5,64], index: 13, kind: output, shape index: {}]
  %s14 = sld [smem:[#allocation0]]
  $region89: #{vit_forward.4} parent=0
    _
  %s16 = ssub.s32 1, %s14
  %s17 = scalar_select 0, %s16, %s14
  loop: start=0, step=1, limit=6
  $region2: #{vit_forward.4} parent=0 // loop_pre_header
    _
  $region3: #{vit_forward.4} parent=0 // loop_header
    %s19 = sphi 0, %s23
    %p20 = scmp.ge.s32.totalorder %s19, 6
    %s26 = sphi 0, %s38
    %s27 = sphi 0, %s34
    %s28 = sphi 0, %s26
    %s29 = sphi 0, %s27
    %s30 = sphi 0, %s28
    %s31 = sphi 0, %s29
    %s41 = sphi 0, %s43
    %s44 = sphi 0, %s41
    %s45 = sphi 0, %s44
    %s61 = sphi 0, %s45
    %s67 = sphi 0, %s69
    %s70 = sphi 0, %s67
    %s71 = sphi 0, %s70
    %s87 = sphi 0, %s71
    %s93 = sphi 0, %s95
    %s96 = sphi 0, %s93
    %s97 = sphi 0, %s96
    %s113 = sphi 0, %s97
    %s119 = sphi 0, %s121
    %s122 = sphi 0, %s119
    %s123 = sphi 0, %s122
    %s139 = sphi 0, %s123
    %s145 = sphi 0, %s147
    %s148 = sphi 0, %s145
    %s149 = sphi 0, %s148
    %s165 = sphi 0, %s149
    %s171 = sphi 0, %s173
    %s174 = sphi 0, %s171
    %s175 = sphi 0, %s174
    %s191 = sphi 0, %s175
    %s197 = sphi 0, %s199
    %s200 = sphi 0, %s197
    %s201 = sphi 0, %s200
    %s217 = sphi 0, %s201
    %s223 = sphi 0, %s225
    %s226 = sphi 0, %s223
    %s227 = sphi 0, %s226
    %s243 = sphi 0, %s227
    %s249 = sphi 0, %s251
    %s252 = sphi 0, %s249
    %s253 = sphi 0, %s252
    %s269 = sphi 0, %s253
    %s275 = sphi 0, %s277
    %s278 = sphi 0, %s275
    %s279 = sphi 0, %s278
    %s295 = sphi 0, %s279
    %s301 = sphi 0, %s303
    %s304 = sphi 0, %s301
    %s305 = sphi 0, %s304
    %s321 = sphi 0, %s305
    %s327 = sphi 0, %s329
    %s330 = sphi 0, %s327
    %s331 = sphi 0, %s330
    %s347 = sphi 0, %s331
    %s353 = sphi 0, %s355
    %s356 = sphi 0, %s353
    %s357 = sphi 0, %s356
    %s373 = sphi 0, %s357
    %s379 = sphi 0, %s381
    %s382 = sphi 0, %s379
    %s383 = sphi 0, %s382
    %s399 = sphi 0, %s383
  $region4: #{vit_forward.4} parent=0 // loop_header_branch
    %22 = sbr.rel (%p20) target = $region8
  $region5: #{vit_forward.4} parent=0 // loop_body
    %s24 = ssub.s32 %s19, 1
    %s25 = ssub.s32 %s19, 2
    %s32 = sadd.s32 1, %s27
    %p33 = scmp.ge.s32.totalorder %s32, 2
    %s34 = scalar_select %p33, 0, %s32
    %s35 = sadd.s32 1, %s26
    %s36 = scalar_select %p33, %s35, %s26
    %p37 = scmp.ge.s32.totalorder %s36, 2
    %s38 = scalar_select %p37, 0, %s36
    %s39 = ssub.s32 %s26, %s38
    %p40 = scmp.eq.s32.totalorder %s39, 0
    %s42 = sadd.s32 %s41, 1
    %s43 = scalar_select %p40, %s41, %s42
    %p46 = pneg %p40
    %p47 = scmp.eq.s32.totalorder %s19, 3
    %p48 = por %p46, %p47
    %p49 = scmp.ne.s32.totalorder %s41, %s44
    %p50 = scmp.eq.s32.totalorder %s19, 0
    %p51 = por %p49, %p50
    %p52 = scmp.ne.s32.totalorder %s41, %s44
    %p53 = scmp.eq.s32.totalorder %s24, 3
    %p54 = por %p52, %p53
    %p55 = scmp.ne.s32.totalorder %s44, %s45
    %p56 = scmp.eq.s32.totalorder %s24, 0
    %p57 = por %p55, %p56
    %p58 = scmp.ne.s32.totalorder %s44, %s45
    %p59 = scmp.eq.s32.totalorder %s25, 3
    %p60 = por %p58, %p59
    %p62 = scmp.ne.s32.totalorder %s45, %s61
    %p63 = scmp.eq.s32.totalorder %s25, 0
    %p64 = por %p62, %p63
    %s65 = ssub.s32 %s27, %s34
    %p66 = scmp.eq.s32.totalorder %s65, 0
    %s68 = sadd.s32 %s67, 1
    %s69 = scalar_select %p66, %s67, %s68
    %p72 = pneg %p66
    %p73 = scmp.eq.s32.totalorder %s19, 3
    %p74 = por %p72, %p73
    %p75 = scmp.ne.s32.totalorder %s67, %s70
    %p76 = scmp.eq.s32.totalorder %s19, 0
    %p77 = por %p75, %p76
    %p78 = scmp.ne.s32.totalorder %s67, %s70
    %p79 = scmp.eq.s32.totalorder %s24, 3
    %p80 = por %p78, %p79
    %p81 = scmp.ne.s32.totalorder %s70, %s71
    %p82 = scmp.eq.s32.totalorder %s24, 0
    %p83 = por %p81, %p82
    %p84 = scmp.ne.s32.totalorder %s70, %s71
    %p85 = scmp.eq.s32.totalorder %s25, 3
    %p86 = por %p84, %p85
    %p88 = scmp.ne.s32.totalorder %s71, %s87
    %p89 = scmp.eq.s32.totalorder %s25, 0
    %p90 = por %p88, %p89
    %s91 = ssub.s32 %s27, %s34
    %p92 = scmp.eq.s32.totalorder %s91, 0
    %s94 = sadd.s32 %s93, 1
    %s95 = scalar_select %p92, %s93, %s94
    %p98 = pneg %p92
    %p99 = scmp.eq.s32.totalorder %s19, 3
    %p100 = por %p98, %p99
    %p101 = scmp.ne.s32.totalorder %s93, %s96
    %p102 = scmp.eq.s32.totalorder %s19, 0
    %p103 = por %p101, %p102
    %p104 = scmp.ne.s32.totalorder %s93, %s96
    %p105 = scmp.eq.s32.totalorder %s24, 3
    %p106 = por %p104, %p105
    %p107 = scmp.ne.s32.totalorder %s96, %s97
    %p108 = scmp.eq.s32.totalorder %s24, 0
    %p109 = por %p107, %p108
    %p110 = scmp.ne.s32.totalorder %s96, %s97
    %p111 = scmp.eq.s32.totalorder %s25, 3
    %p112 = por %p110, %p111
    %p114 = scmp.ne.s32.totalorder %s97, %s113
    %p115 = scmp.eq.s32.totalorder %s25, 0
    %p116 = por %p114, %p115
    %s117 = ssub.s32 %s27, %s34
    %p118 = scmp.eq.s32.totalorder %s117, 0
    %s120 = sadd.s32 %s119, 1
    %s121 = scalar_select %p118, %s119, %s120
    %p124 = pneg %p118
    %p125 = scmp.eq.s32.totalorder %s19, 3
    %p126 = por %p124, %p125
    %p127 = scmp.ne.s32.totalorder %s119, %s122
    %p128 = scmp.eq.s32.totalorder %s19, 0
    %p129 = por %p127, %p128
    %p130 = scmp.ne.s32.totalorder %s119, %s122
    %p131 = scmp.eq.s32.totalorder %s24, 3
    %p132 = por %p130, %p131
    %p133 = scmp.ne.s32.totalorder %s122, %s123
    %p134 = scmp.eq.s32.totalorder %s24, 0
    %p135 = por %p133, %p134
    %p136 = scmp.ne.s32.totalorder %s122, %s123
    %p137 = scmp.eq.s32.totalorder %s25, 3
    %p138 = por %p136, %p137
    %p140 = scmp.ne.s32.totalorder %s123, %s139
    %p141 = scmp.eq.s32.totalorder %s25, 0
    %p142 = por %p140, %p141
    %s143 = ssub.s32 %s27, %s34
    %p144 = scmp.eq.s32.totalorder %s143, 0
    %s146 = sadd.s32 %s145, 1
    %s147 = scalar_select %p144, %s145, %s146
    %p150 = pneg %p144
    %p151 = scmp.eq.s32.totalorder %s19, 3
    %p152 = por %p150, %p151
    %p153 = scmp.ne.s32.totalorder %s145, %s148
    %p154 = scmp.eq.s32.totalorder %s19, 0
    %p155 = por %p153, %p154
    %p156 = scmp.ne.s32.totalorder %s145, %s148
    %p157 = scmp.eq.s32.totalorder %s24, 3
    %p158 = por %p156, %p157
    %p159 = scmp.ne.s32.totalorder %s148, %s149
    %p160 = scmp.eq.s32.totalorder %s24, 0
    %p161 = por %p159, %p160
    %p162 = scmp.ne.s32.totalorder %s148, %s149
    %p163 = scmp.eq.s32.totalorder %s25, 3
    %p164 = por %p162, %p163
    %p166 = scmp.ne.s32.totalorder %s149, %s165
    %p167 = scmp.eq.s32.totalorder %s25, 0
    %p168 = por %p166, %p167
    %s169 = ssub.s32 %s27, %s34
    %p170 = scmp.eq.s32.totalorder %s169, 0
    %s172 = sadd.s32 %s171, 1
    %s173 = scalar_select %p170, %s171, %s172
    %p176 = pneg %p170
    %p177 = scmp.eq.s32.totalorder %s19, 3
    %p178 = por %p176, %p177
    %p179 = scmp.ne.s32.totalorder %s171, %s174
    %p180 = scmp.eq.s32.totalorder %s19, 0
    %p181 = por %p179, %p180
    %p182 = scmp.ne.s32.totalorder %s171, %s174
    %p183 = scmp.eq.s32.totalorder %s24, 3
    %p184 = por %p182, %p183
    %p185 = scmp.ne.s32.totalorder %s174, %s175
    %p186 = scmp.eq.s32.totalorder %s24, 0
    %p187 = por %p185, %p186
    %p188 = scmp.ne.s32.totalorder %s174, %s175
    %p189 = scmp.eq.s32.totalorder %s25, 3
    %p190 = por %p188, %p189
    %p192 = scmp.ne.s32.totalorder %s175, %s191
    %p193 = scmp.eq.s32.totalorder %s25, 0
    %p194 = por %p192, %p193
    %s195 = ssub.s32 %s27, %s34
    %p196 = scmp.eq.s32.totalorder %s195, 0
    %s198 = sadd.s32 %s197, 1
    %s199 = scalar_select %p196, %s197, %s198
    %p202 = pneg %p196
    %p203 = scmp.eq.s32.totalorder %s19, 3
    %p204 = por %p202, %p203
    %p205 = scmp.ne.s32.totalorder %s197, %s200
    %p206 = scmp.eq.s32.totalorder %s19, 0
    %p207 = por %p205, %p206
    %p208 = scmp.ne.s32.totalorder %s197, %s200
    %p209 = scmp.eq.s32.totalorder %s24, 3
    %p210 = por %p208, %p209
    %p211 = scmp.ne.s32.totalorder %s200, %s201
    %p212 = scmp.eq.s32.totalorder %s24, 0
    %p213 = por %p211, %p212
    %p214 = scmp.ne.s32.totalorder %s200, %s201
    %p215 = scmp.eq.s32.totalorder %s25, 3
    %p216 = por %p214, %p215
    %p218 = scmp.ne.s32.totalorder %s201, %s217
    %p219 = scmp.eq.s32.totalorder %s25, 0
    %p220 = por %p218, %p219
    %s221 = ssub.s32 %s27, %s34
    %p222 = scmp.eq.s32.totalorder %s221, 0
    %s224 = sadd.s32 %s223, 1
    %s225 = scalar_select %p222, %s223, %s224
    %p228 = pneg %p222
    %p229 = scmp.eq.s32.totalorder %s19, 3
    %p230 = por %p228, %p229
    %p231 = scmp.ne.s32.totalorder %s223, %s226
    %p232 = scmp.eq.s32.totalorder %s19, 0
    %p233 = por %p231, %p232
    %p234 = scmp.ne.s32.totalorder %s223, %s226
    %p235 = scmp.eq.s32.totalorder %s24, 3
    %p236 = por %p234, %p235
    %p237 = scmp.ne.s32.totalorder %s226, %s227
    %p238 = scmp.eq.s32.totalorder %s24, 0
    %p239 = por %p237, %p238
    %p240 = scmp.ne.s32.totalorder %s226, %s227
    %p241 = scmp.eq.s32.totalorder %s25, 3
    %p242 = por %p240, %p241
    %p244 = scmp.ne.s32.totalorder %s227, %s243
    %p245 = scmp.eq.s32.totalorder %s25, 0
    %p246 = por %p244, %p245
    %s247 = ssub.s32 %s27, %s34
    %p248 = scmp.eq.s32.totalorder %s247, 0
    %s250 = sadd.s32 %s249, 1
    %s251 = scalar_select %p248, %s249, %s250
    %p254 = pneg %p248
    %p255 = scmp.eq.s32.totalorder %s19, 3
    %p256 = por %p254, %p255
    %p257 = scmp.ne.s32.totalorder %s249, %s252
    %p258 = scmp.eq.s32.totalorder %s19, 0
    %p259 = por %p257, %p258
    %p260 = scmp.ne.s32.totalorder %s249, %s252
    %p261 = scmp.eq.s32.totalorder %s24, 3
    %p262 = por %p260, %p261
    %p263 = scmp.ne.s32.totalorder %s252, %s253
    %p264 = scmp.eq.s32.totalorder %s24, 0
    %p265 = por %p263, %p264
    %p266 = scmp.ne.s32.totalorder %s252, %s253
    %p267 = scmp.eq.s32.totalorder %s25, 3
    %p268 = por %p266, %p267
    %p270 = scmp.ne.s32.totalorder %s253, %s269
    %p271 = scmp.eq.s32.totalorder %s25, 0
    %p272 = por %p270, %p271
    %s273 = ssub.s32 %s27, %s34
    %p274 = scmp.eq.s32.totalorder %s273, 0
    %s276 = sadd.s32 %s275, 1
    %s277 = scalar_select %p274, %s275, %s276
    %p280 = pneg %p274
    %p281 = scmp.eq.s32.totalorder %s19, 3
    %p282 = por %p280, %p281
    %p283 = scmp.ne.s32.totalorder %s275, %s278
    %p284 = scmp.eq.s32.totalorder %s19, 0
    %p285 = por %p283, %p284
    %p286 = scmp.ne.s32.totalorder %s275, %s278
    %p287 = scmp.eq.s32.totalorder %s24, 3
    %p288 = por %p286, %p287
    %p289 = scmp.ne.s32.totalorder %s278, %s279
    %p290 = scmp.eq.s32.totalorder %s24, 0
    %p291 = por %p289, %p290
    %p292 = scmp.ne.s32.totalorder %s278, %s279
    %p293 = scmp.eq.s32.totalorder %s25, 3
    %p294 = por %p292, %p293
    %p296 = scmp.ne.s32.totalorder %s279, %s295
    %p297 = scmp.eq.s32.totalorder %s25, 0
    %p298 = por %p296, %p297
    %s299 = ssub.s32 %s27, %s34
    %p300 = scmp.eq.s32.totalorder %s299, 0
    %s302 = sadd.s32 %s301, 1
    %s303 = scalar_select %p300, %s301, %s302
    %p306 = pneg %p300
    %p307 = scmp.eq.s32.totalorder %s19, 3
    %p308 = por %p306, %p307
    %p309 = scmp.ne.s32.totalorder %s301, %s304
    %p310 = scmp.eq.s32.totalorder %s19, 0
    %p311 = por %p309, %p310
    %p312 = scmp.ne.s32.totalorder %s301, %s304
    %p313 = scmp.eq.s32.totalorder %s24, 3
    %p314 = por %p312, %p313
    %p315 = scmp.ne.s32.totalorder %s304, %s305
    %p316 = scmp.eq.s32.totalorder %s24, 0
    %p317 = por %p315, %p316
    %p318 = scmp.ne.s32.totalorder %s304, %s305
    %p319 = scmp.eq.s32.totalorder %s25, 3
    %p320 = por %p318, %p319
    %p322 = scmp.ne.s32.totalorder %s305, %s321
    %p323 = scmp.eq.s32.totalorder %s25, 0
    %p324 = por %p322, %p323
    %s325 = ssub.s32 %s27, %s34
    %p326 = scmp.eq.s32.totalorder %s325, 0
    %s328 = sadd.s32 %s327, 1
    %s329 = scalar_select %p326, %s327, %s328
    %p332 = pneg %p326
    %p333 = scmp.eq.s32.totalorder %s19, 3
    %p334 = por %p332, %p333
    %p335 = scmp.ne.s32.totalorder %s327, %s330
    %p336 = scmp.eq.s32.totalorder %s19, 0
    %p337 = por %p335, %p336
    %p338 = scmp.ne.s32.totalorder %s327, %s330
    %p339 = scmp.eq.s32.totalorder %s24, 3
    %p340 = por %p338, %p339
    %p341 = scmp.ne.s32.totalorder %s330, %s331
    %p342 = scmp.eq.s32.totalorder %s24, 0
    %p343 = por %p341, %p342
    %p344 = scmp.ne.s32.totalorder %s330, %s331
    %p345 = scmp.eq.s32.totalorder %s25, 3
    %p346 = por %p344, %p345
    %p348 = scmp.ne.s32.totalorder %s331, %s347
    %p349 = scmp.eq.s32.totalorder %s25, 0
    %p350 = por %p348, %p349
    %s351 = ssub.s32 %s27, %s34
    %p352 = scmp.eq.s32.totalorder %s351, 0
    %s354 = sadd.s32 %s353, 1
    %s355 = scalar_select %p352, %s353, %s354
    %p358 = pneg %p352
    %p359 = scmp.eq.s32.totalorder %s19, 3
    %p360 = por %p358, %p359
    %p361 = scmp.ne.s32.totalorder %s353, %s356
    %p362 = scmp.eq.s32.totalorder %s19, 0
    %p363 = por %p361, %p362
    %p364 = scmp.ne.s32.totalorder %s353, %s356
    %p365 = scmp.eq.s32.totalorder %s24, 3
    %p366 = por %p364, %p365
    %p367 = scmp.ne.s32.totalorder %s356, %s357
    %p368 = scmp.eq.s32.totalorder %s24, 0
    %p369 = por %p367, %p368
    %p370 = scmp.ne.s32.totalorder %s356, %s357
    %p371 = scmp.eq.s32.totalorder %s25, 3
    %p372 = por %p370, %p371
    %p374 = scmp.ne.s32.totalorder %s357, %s373
    %p375 = scmp.eq.s32.totalorder %s25, 0
    %p376 = por %p374, %p375
    %s377 = ssub.s32 %s26, %s38
    %p378 = scmp.eq.s32.totalorder %s377, 0
    %s380 = sadd.s32 %s379, 1
    %s381 = scalar_select %p378, %s379, %s380
    %p384 = pneg %p378
    %p385 = scmp.eq.s32.totalorder %s19, 3
    %p386 = por %p384, %p385
    %p387 = scmp.ne.s32.totalorder %s379, %s382
    %p388 = scmp.eq.s32.totalorder %s19, 0
    %p389 = por %p387, %p388
    %p390 = scmp.ne.s32.totalorder %s379, %s382
    %p391 = scmp.eq.s32.totalorder %s24, 3
    %p392 = por %p390, %p391
    %p393 = scmp.ne.s32.totalorder %s382, %s383
    %p394 = scmp.eq.s32.totalorder %s24, 0
    %p395 = por %p393, %p394
    %p396 = scmp.ne.s32.totalorder %s382, %s383
    %p397 = scmp.eq.s32.totalorder %s25, 3
    %p398 = por %p396, %p397
    %p400 = scmp.ne.s32.totalorder %s383, %s399
    %p401 = scmp.eq.s32.totalorder %s25, 0
    %p402 = por %p400, %p401
    %p403 = scmp.le.s32.totalorder 1, %s19
    %p404 = scmp.lt.s32.totalorder %s19, 5
    %p405 = pnand %p403, %p404
    %p406 = pneg %p405
    // Predicated region
    $region9: #{vit_forward.4} parent=5 // pred_check
      _
    $region10: #{vit_forward.4} parent=5 // pred_check_branch
      %408 = sbr.rel (%p405) target = $region12
    $region11: #{vit_forward.4} parent=5 // pred_region
      %s409 = ssub.s32 %s19, 1
    $region12: #{vit_forward.4} parent=5 // pred_fallthru
      _
    %p410 = scmp.lt.s32.totalorder %s19, 4
    // Predicated region
    $region13: #{vit_forward.4} parent=5 // pred_check
      %p411 = pneg %p410
    $region14: #{vit_forward.4} parent=5 // pred_check_branch
      %413 = sbr.rel (%p411) target = $region16
    $region15: #{vit_forward.4} parent=5 // pred_region
      // Predicated region
      $region17: #{vit_forward.4} parent=15 // pred_check
        %p414 = pneg %p51
      $region18: #{vit_forward.4} parent=15 // pred_check_branch
        %416 = sbr.rel (%p414) target = $region20
      $region19: #{vit_forward.4} parent=15 // pred_region
        %p417 = scmp.lt.s32.totalorder %s26, 1
        %s418 = scalar_select %p417, %s26, 1
        %s419 = smul.addr %s418, 8
        %s420 = scalar_lea.vmem %s0, %s419
      $region20: #{vit_forward.4} parent=15 // pred_fallthru
        _
      // Predicated region
      $region21: #{vit_forward.4} parent=15 // pred_check
        %p421 = pneg %p77
      $region22: #{vit_forward.4} parent=15 // pred_check_branch
        %423 = sbr.rel (%p421) target = $region24
      $region23: #{vit_forward.4} parent=15 // pred_region
        %p424 = scmp.lt.s32.totalorder %s27, 1
        %s425 = scalar_select %p424, %s27, 1
        %s426 = scalar_lea.vmem %s1, %s425
      $region24: #{vit_forward.4} parent=15 // pred_fallthru
        _
      // Predicated region
      $region25: #{vit_forward.4} parent=15 // pred_check
        %p427 = pneg %p103
      $region26: #{vit_forward.4} parent=15 // pred_check_branch
        %429 = sbr.rel (%p427) target = $region28
      $region27: #{vit_forward.4} parent=15 // pred_region
        %p430 = scmp.lt.s32.totalorder %s27, 1
        %s431 = scalar_select %p430, %s27, 1
        %s432 = scalar_lea.vmem %s2, %s431
      $region28: #{vit_forward.4} parent=15 // pred_fallthru
        _
      // Predicated region
      $region29: #{vit_forward.4} parent=15 // pred_check
        %p433 = pneg %p129
      $region30: #{vit_forward.4} parent=15 // pred_check_branch
        %435 = sbr.rel (%p433) target = $region32
      $region31: #{vit_forward.4} parent=15 // pred_region
        %p436 = scmp.lt.s32.totalorder %s27, 1
        %s437 = scalar_select %p436, %s27, 1
        %s438 = smul.addr %s437, 16
        %s439 = smul.addr %s438, 4
        %s440 = scalar_lea.vmem %s3, %s439
      $region32: #{vit_forward.4} parent=15 // pred_fallthru
        _
      // Predicated region
      $region33: #{vit_forward.4} parent=15 // pred_check
        %p441 = pneg %p155
      $region34: #{vit_forward.4} parent=15 // pred_check_branch
        %443 = sbr.rel (%p441) target = $region36
      $region35: #{vit_forward.4} parent=15 // pred_region
        %p444 = scmp.lt.s32.totalorder %s27, 1
        %s445 = scalar_select %p444, %s27, 1
        %s446 = smul.addr %s445, 2
        %s447 = scalar_lea.vmem %s4, %s446
      $region36: #{vit_forward.4} parent=15 // pred_fallthru
        _
      // Predicated region
      $region37: #{vit_forward.4} parent=15 // pred_check
        %p448 = pneg %p181
      $region38: #{vit_forward.4} parent=15 // pred_check_branch
        %450 = sbr.rel (%p448) target = $region40
      $region39: #{vit_forward.4} parent=15 // pred_region
        %p451 = scmp.lt.s32.totalorder %s27, 1
        %s452 = scalar_select %p451, %s27, 1
        %s453 = smul.addr %s452, 8
        %s454 = smul.addr %s453, 4
        %s455 = scalar_lea.vmem %s5, %s454
      $region40: #{vit_forward.4} parent=15 // pred_fallthru
        _
      // Predicated region
      $region41: #{vit_forward.4} parent=15 // pred_check
        %p456 = pneg %p207
      $region42: #{vit_forward.4} parent=15 // pred_check_branch
        %458 = sbr.rel (%p456) target = $region44
      $region43: #{vit_forward.4} parent=15 // pred_region
        %p459 = scmp.lt.s32.totalorder %s27, 1
        %s460 = scalar_select %p459, %s27, 1
        %s461 = scalar_lea.vmem %s6, %s460
      $region44: #{vit_forward.4} parent=15 // pred_fallthru
        _
      // Predicated region
      $region45: #{vit_forward.4} parent=15 // pred_check
        %p462 = pneg %p233
      $region46: #{vit_forward.4} parent=15 // pred_check_branch
        %464 = sbr.rel (%p462) target = $region48
      $region47: #{vit_forward.4} parent=15 // pred_region
        %p465 = scmp.lt.s32.totalorder %s27, 1
        %s466 = scalar_select %p465, %s27, 1
        %s467 = scalar_lea.vmem %s7, %s466
      $region48: #{vit_forward.4} parent=15 // pred_fallthru
        _
      // Predicated region
      $region49: #{vit_forward.4} parent=15 // pred_check
        %p468 = pneg %p259
      $region50: #{vit_forward.4} parent=15 // pred_check_branch
        %470 = sbr.rel (%p468) target = $region52
      $region51: #{vit_forward.4} parent=15 // pred_region
        %p471 = scmp.lt.s32.totalorder %s27, 1
        %s472 = scalar_select %p471, %s27, 1
        %s473 = scalar_lea.vmem %s8, %s472
      $region52: #{vit_forward.4} parent=15 // pred_fallthru
        _
      // Predicated region
      $region53: #{vit_forward.4} parent=15 // pred_check
        %p474 = pneg %p285
      $region54: #{vit_forward.4} parent=15 // pred_check_branch
        %476 = sbr.rel (%p474) target = $region56
      $region55: #{vit_forward.4} parent=15 // pred_region
        %p477 = scmp.lt.s32.totalorder %s27, 1
        %s478 = scalar_select %p477, %s27, 1
        %s479 = smul.addr %s478, 8
        %s480 = smul.addr %s479, 4
        %s481 = scalar_lea.vmem %s9, %s480
      $region56: #{vit_forward.4} parent=15 // pred_fallthru
        _
      // Predicated region
      $region57: #{vit_forward.4} parent=15 // pred_check
        %p482 = pneg %p311
      $region58: #{vit_forward.4} parent=15 // pred_check_branch
        %484 = sbr.rel (%p482) target = $region60
      $region59: #{vit_forward.4} parent=15 // pred_region
        %p485 = scmp.lt.s32.totalorder %s27, 1
        %s486 = scalar_select %p485, %s27, 1
        %s487 = scalar_lea.vmem %s10, %s486
      $region60: #{vit_forward.4} parent=15 // pred_fallthru
        _
      // Predicated region
      $region61: #{vit_forward.4} parent=15 // pred_check
        %p488 = pneg %p337
      $region62: #{vit_forward.4} parent=15 // pred_check_branch
        %490 = sbr.rel (%p488) target = $region64
      $region63: #{vit_forward.4} parent=15 // pred_region
        %p491 = scmp.lt.s32.totalorder %s27, 1
        %s492 = scalar_select %p491, %s27, 1
        %s493 = smul.addr %s492, 16
        %s494 = smul.addr %s493, 4
        %s495 = scalar_lea.vmem %s11, %s494
      $region64: #{vit_forward.4} parent=15 // pred_fallthru
        _
      // Predicated region
      $region65: #{vit_forward.4} parent=15 // pred_check
        %p496 = pneg %p363
      $region66: #{vit_forward.4} parent=15 // pred_check_branch
        %498 = sbr.rel (%p496) target = $region68
      $region67: #{vit_forward.4} parent=15 // pred_region
        %p499 = scmp.lt.s32.totalorder %s27, 1
        %s500 = scalar_select %p499, %s27, 1
        %s501 = scalar_lea.vmem %s12, %s500
      $region68: #{vit_forward.4} parent=15 // pred_fallthru
        _
    $region16: #{vit_forward.4} parent=5 // pred_fallthru
      _
    %p502 = scmp.le.s32.totalorder 1, %s19
    %p503 = scmp.lt.s32.totalorder %s19, 5
    %p504 = pnand %p502, %p503
    %p505 = pneg %p504
    // Predicated region
    $region69: #{vit_forward.4} parent=5 // pred_check
      _
    $region70: #{vit_forward.4} parent=5 // pred_check_branch
      %507 = sbr.rel (%p504) target = $region72
    $region71: #{vit_forward.4} parent=5 // pred_region
      %s508 = ssub.s32 %s19, 1
      %p509 = scmp.lt.s32.totalorder %s28, 1
      %s510 = scalar_select %p509, %s28, 1
      %s511 = smul.addr %s510, 8
      %s512 = scalar_lea.vmem %s0, %s511
      %p513 = pneg %p57
      %p514 = pneg %p54
      %p515 = scmp.lt.s32.totalorder %s29, 1
      %s516 = scalar_select %p515, %s29, 1
      %s517 = scalar_lea.vmem %s1, %s516
      %p518 = pneg %p83
      %p519 = pneg %p80
      %p520 = scmp.lt.s32.totalorder %s29, 1
      %s521 = scalar_select %p520, %s29, 1
      %s522 = scalar_lea.vmem %s2, %s521
      %p523 = pneg %p109
      %p524 = pneg %p106
      %p525 = scmp.lt.s32.totalorder %s29, 1
      %s526 = scalar_select %p525, %s29, 1
      %s527 = smul.addr %s526, 16
      %s528 = smul.addr %s527, 4
      %s529 = scalar_lea.vmem %s3, %s528
      %p530 = pneg %p135
      %p531 = pneg %p132
      %p532 = scmp.lt.s32.totalorder %s29, 1
      %s533 = scalar_select %p532, %s29, 1
      %s534 = smul.addr %s533, 2
      %s535 = scalar_lea.vmem %s4, %s534
      %p536 = pneg %p161
      %p537 = pneg %p158
      %p538 = scmp.lt.s32.totalorder %s29, 1
      %s539 = scalar_select %p538, %s29, 1
      %s540 = smul.addr %s539, 8
      %s541 = smul.addr %s540, 4
      %s542 = scalar_lea.vmem %s5, %s541
      %p543 = pneg %p187
      %p544 = pneg %p184
      %p545 = scmp.lt.s32.totalorder %s29, 1
      %s546 = scalar_select %p545, %s29, 1
      %s547 = scalar_lea.vmem %s6, %s546
      %p548 = pneg %p213
      %p549 = pneg %p210
      %p550 = scmp.lt.s32.totalorder %s29, 1
      %s551 = scalar_select %p550, %s29, 1
      %s552 = scalar_lea.vmem %s7, %s551
      %p553 = pneg %p239
      %p554 = pneg %p236
      %p555 = scmp.lt.s32.totalorder %s29, 1
      %s556 = scalar_select %p555, %s29, 1
      %s557 = scalar_lea.vmem %s8, %s556
      %p558 = pneg %p265
      %p559 = pneg %p262
      %p560 = scmp.lt.s32.totalorder %s29, 1
      %s561 = scalar_select %p560, %s29, 1
      %s562 = smul.addr %s561, 8
      %s563 = smul.addr %s562, 4
      %s564 = scalar_lea.vmem %s9, %s563
      %p565 = pneg %p291
      %p566 = pneg %p288
      %p567 = scmp.lt.s32.totalorder %s29, 1
      %s568 = scalar_select %p567, %s29, 1
      %s569 = scalar_lea.vmem %s10, %s568
      %p570 = pneg %p317
      %p571 = pneg %p314
      %p572 = scmp.lt.s32.totalorder %s29, 1
      %s573 = scalar_select %p572, %s29, 1
      %s574 = smul.addr %s573, 16
      %s575 = smul.addr %s574, 4
      %s576 = scalar_lea.vmem %s11, %s575
      %p577 = pneg %p343
      %p578 = pneg %p340
      %p579 = scmp.lt.s32.totalorder %s29, 1
      %s580 = scalar_select %p579, %s29, 1
      %s581 = scalar_lea.vmem %s12, %s580
      %p582 = pneg %p369
      %p583 = pneg %p366
      %p584 = pneg %p395
      %p585 = pneg %p392
      %p586 = scmp.lt.s32.totalorder %s28, 1
      %s587 = scalar_select %p586, %s28, 1
      %s588 = smul.addr %s587, 8
      %s589 = scalar_lea.vmem %s13, %s588
      %p590 = scmp.lt.s32.totalorder %s28, 1
      %s591 = scalar_select %p590, %s28, 1
      %s592 = smul.addr %s591, 8
      %s593 = scalar_lea.vmem %s0, %s592
      %p594 = scmp.lt.s32.totalorder %s29, 1
      %s595 = scalar_select %p594, %s29, 1
      %s596 = scalar_lea.vmem %s1, %s595
      %p597 = scmp.lt.s32.totalorder %s29, 1
      %s598 = scalar_select %p597, %s29, 1
      %s599 = scalar_lea.vmem %s2, %s598
      %p600 = scmp.lt.s32.totalorder %s29, 1
      %s601 = scalar_select %p600, %s29, 1
      %s602 = smul.addr %s601, 16
      %s603 = smul.addr %s602, 4
      %s604 = scalar_lea.vmem %s3, %s603
      %p605 = scmp.lt.s32.totalorder %s29, 1
      %s606 = scalar_select %p605, %s29, 1
      %s607 = smul.addr %s606, 2
      %s608 = scalar_lea.vmem %s4, %s607
      %p609 = scmp.lt.s32.totalorder %s29, 1
      %s610 = scalar_select %p609, %s29, 1
      %s611 = smul.addr %s610, 8
      %s612 = smul.addr %s611, 4
      %s613 = scalar_lea.vmem %s5, %s612
      %p614 = scmp.lt.s32.totalorder %s29, 1
      %s615 = scalar_select %p614, %s29, 1
      %s616 = scalar_lea.vmem %s6, %s615
      %p617 = scmp.lt.s32.totalorder %s29, 1
      %s618 = scalar_select %p617, %s29, 1
      %s619 = scalar_lea.vmem %s7, %s618
      %p620 = scmp.lt.s32.totalorder %s29, 1
      %s621 = scalar_select %p620, %s29, 1
      %s622 = scalar_lea.vmem %s8, %s621
      %p623 = scmp.lt.s32.totalorder %s29, 1
      %s624 = scalar_select %p623, %s29, 1
      %s625 = smul.addr %s624, 8
      %s626 = smul.addr %s625, 4
      %s627 = scalar_lea.vmem %s9, %s626
      %p628 = scmp.lt.s32.totalorder %s29, 1
      %s629 = scalar_select %p628, %s29, 1
      %s630 = scalar_lea.vmem %s10, %s629
      %p631 = scmp.lt.s32.totalorder %s29, 1
      %s632 = scalar_select %p631, %s29, 1
      %s633 = smul.addr %s632, 16
      %s634 = smul.addr %s633, 4
      %s635 = scalar_lea.vmem %s11, %s634
      %p636 = scmp.lt.s32.totalorder %s29, 1
      %s637 = scalar_select %p636, %s29, 1
      %s638 = scalar_lea.vmem %s12, %s637
      %p639 = scmp.lt.s32.totalorder %s28, 1
      %s640 = scalar_select %p639, %s28, 1
      %s641 = smul.addr %s640, 8
      %s642 = scalar_lea.vmem %s13, %s641
      %p644 = scmp.eq.s32.totalorder %s29, 0
      // Predicated region
      $region73: #{vit_forward.4} parent=71 // pred_check
        %p645 = pneg %p644
      $region74: #{vit_forward.4} parent=71 // pred_check_branch
        %647 = sbr.rel (%p645) target = $region76
      $region75: #{vit_forward.4} parent=71 // pred_region
        %v648 = vld [vmem:[%s593] sm:$0x1f]
        %vm649 = vcmask 520192
        %650 = vst.msk [vmem:[%s642] sm:$0x1f] %vm649, %v648
      $region76: #{vit_forward.4} parent=71 // pred_fallthru
        _
      %v651 = vld [vmem:[%s642] sm:$0x1f]
      %v652 = vld [vmem:[%s596] sm:$0x1]
      %v653 = vld [vmem:[%s599] sm:$0x1]
      %vm654 = vcmask 520192
      %v655 = vsel %vm654, %v651, 0.0
      %656 = vadd.xlane.f32.xlu0 %v655
      %v657 = vpop.xlane.xlu0 %656
      %v658 = vrcp.pop 64.0
      %v659 = vmul.f32 %v657, %v658
      %v660 = vsub.f32 %v651, %v659
      %v661 = vmul.f32 %v660, %v660
      %v662 = vsel %vm654, %v661, 0.0
      %663 = vadd.xlane.f32.xlu0 %v662
      %v664 = vpop.xlane.xlu0 %663
      %v665 = vmul.f32 %v664, %v658
      %v666 = vadd.f32 %v665, 1e-06
      %v667 = vrsqrt.pop %v666
      %v668 = vmul.f32 %v660, %v667
      %v670 = vlaneseq
      %v671 = vshrl.u32 %v670, 7
      %v672 = vsub.s32 0, %v671
      %v673 = vrot.slane %v652, %v672
      %v675 = vmul.f32 %v668, %v673
      %v677 = vlaneseq
      %v678 = vshrl.u32 %v677, 7
      %v679 = vsub.s32 0, %v678
      %v680 = vrot.slane %v653, %v679
      %v682 = vadd.f32 %v675, %v680
      %v683 = vpack.c.bf16 %v682, %v682
      %v684 = vld [vmem:[%s604] sm:$0xff]
      %v685 = vld [vmem:[%s604 + $0x8] sm:$0xff]
      %v686 = vld [vmem:[%s604 + $0x10] sm:$0xff]
      %v687 = vld [vmem:[%s604 + $0x18] sm:$0xff]
      %v688 = vld [vmem:[%s604 + $0x20] sm:$0xff]
      %v689 = vld [vmem:[%s604 + $0x28] sm:$0xff]
      %v690 = vld [vmem:[%s604 + $0x30] sm:$0xff]
      %v691 = vld [vmem:[%s604 + $0x38] sm:$0xff]
      %v692 = vld [vmem:[%s608] sm:$0x3]
      %v694 = vlaneseq
      %v695 = vshrl.u32 %v694, 7
      %v696 = vsub.s32 0, %v695
      %v697 = vrot.slane %v692, %v696
      %v698 = vlaneseq
      %v699 = vshrl.u32 %v698, 7
      %v700 = vsub.s32 1, %v699
      %v701 = vrot.slane %v692, %v700
      %v712 = vunpack.c.l.b16 %v684
      %v713 = vunpack.c.h.b16 %v684
      %v714 = vunpack.c.l.b16 %v685
      %v715 = vunpack.c.h.b16 %v685
      %v716 = vunpack.c.l.b16 %v686
      %v717 = vunpack.c.h.b16 %v686
      %v718 = vunpack.c.l.b16 %v687
      %v719 = vunpack.c.h.b16 %v687
      %v720 = vunpack.c.l.b16 %v688
      %v721 = vunpack.c.h.b16 %v688
      %v722 = vunpack.c.l.b16 %v689
      %v723 = vunpack.c.h.b16 %v689
      %v724 = vunpack.c.l.b16 %v690
      %v725 = vunpack.c.h.b16 %v690
      %v726 = vunpack.c.l.b16 %v691
      %v727 = vunpack.c.h.b16 %v691
      %v728 = vpack.c.b16 %v714, %v712
      %v729 = vpack.c.b16 %v715, %v713
      %v730 = vpack.c.b16 %v718, %v716
      %v731 = vpack.c.b16 %v719, %v717
      %v732 = vpack.c.b16 %v722, %v720
      %v733 = vpack.c.b16 %v723, %v721
      %v734 = vpack.c.b16 %v726, %v724
      %v735 = vpack.c.b16 %v727, %v725
      %vm744 = vcmask 523264
      %v746 = vsel %vm744, %v683, 0
      %748 = vmatprep.subr.bf16.mxu0 %v729
      %749 = vmatpush1.bf16.msra.mxu0 %v728
      %750 = vmatprep.subr.bf16.mxu0 %v731
      %751 = vmatpush1.bf16.msra.mxu0 %v730
      %752 = vmatprep.subr.bf16.mxu0 %v733
      %753 = vmatpush1.bf16.msra.mxu0 %v732
      %754 = vmatprep.subr.bf16.mxu0 %v735
      %755 = vmatpush1.bf16.msra.mxu0 %v734
      %756 = vmatprep.subr.bf16.mxu0 0
      %757 = vmatpush1.bf16.msra.mxu0 0
      %758 = vmatprep.subr.bf16.mxu0 0
      %759 = vmatpush1.bf16.msra.mxu0 0
      %760 = vmatprep.subr.bf16.mxu0 0
      %761 = vmatpush1.bf16.msra.mxu0 0
      %762 = vmatprep.subr.bf16.mxu0 0
      %763 = vmatpush1.bf16.msra.mxu0 0
      %764 = vmatprep.subr.bf16.mxu0 0
      %765 = vmatpush1.bf16.msra.mxu0 0
      %766 = vmatprep.subr.bf16.mxu0 0
      %767 = vmatpush1.bf16.msra.mxu0 0
      %768 = vmatprep.subr.bf16.mxu0 0
      %769 = vmatpush1.bf16.msra.mxu0 0
      %770 = vmatprep.subr.bf16.mxu0 0
      %771 = vmatpush1.bf16.msra.mxu0 0
      %772 = vmatprep.subr.bf16.mxu0 0
      %773 = vmatpush1.bf16.msra.mxu0 0
      %774 = vmatprep.subr.bf16.mxu0 0
      %775 = vmatpush1.bf16.msra.mxu0 0
      %776 = vmatprep.subr.bf16.mxu0 0
      %777 = vmatpush1.bf16.msra.mxu0 0
      %778 = vmatprep.subr.bf16.mxu0 0
      %779 = vmatpush1.bf16.msra.mxu0 0
      %780 = vmatprep.mubr.bf16.mxu0 0
      %781 = vmatmul.mubr.bf16.gmra.mrb[0].mxu0 %v746
      %v782 = vpop.f32.mrb[0].mxu0
      %v783 = vadd.f32 %v697, %v782
      %v784 = vpop.f32.mrb[0].mxu0
      %v785 = vadd.f32 %v701, %v784
      %v786 = vpop.f32.mrb[0].mxu0
      %v787 = vpop.f32.mrb[0].mxu0
      %788 = vdwg.mxu0
      %v789 = vmul.f32 %v783, 0.25
      %v790 = vpack.c.bf16 %v789, %v789
      %v791 = vpack.c.bf16 %v783, %v783
      %v792 = vpack.c.bf16 %v785, %v785
      %794 = vrot.lane.b32.xlu0 %v791, 64
      %v795 = vpop.permute.xlu0 %794
      %vm796 = vcmask 130048
      %v798 = vsel %vm796, %v790, 0
      %v801 = vsel %vm796, %v795, 0
      %803 = vmatprep.subr.bf16.mxu0 0
      %804 = vmatpush1.bf16.xpose.msra.mxu0 %v801
      %805 = vmatprep.subr.bf16.mxu0 0
      %806 = vmatpush1.bf16.xpose.msra.mxu0 0
      %807 = vmatprep.subr.bf16.mxu0 0
      %808 = vmatpush1.bf16.xpose.msra.mxu0 0
      %809 = vmatprep.subr.bf16.mxu0 0
      %810 = vmatpush1.bf16.xpose.msra.mxu0 0
      %811 = vmatprep.subr.bf16.mxu0 0
      %812 = vmatpush1.bf16.xpose.msra.mxu0 0
      %813 = vmatprep.subr.bf16.mxu0 0
      %814 = vmatpush1.bf16.xpose.msra.mxu0 0
      %815 = vmatprep.subr.bf16.mxu0 0
      %816 = vmatpush1.bf16.xpose.msra.mxu0 0
      %817 = vmatprep.subr.bf16.mxu0 0
      %818 = vmatpush1.bf16.xpose.msra.mxu0 0
      %819 = vmatprep.subr.bf16.mxu0 0
      %820 = vmatpush1.bf16.xpose.msra.mxu0 0
      %821 = vmatprep.subr.bf16.mxu0 0
      %822 = vmatpush1.bf16.xpose.msra.mxu0 0
      %823 = vmatprep.subr.bf16.mxu0 0
      %824 = vmatpush1.bf16.xpose.msra.mxu0 0
      %825 = vmatprep.subr.bf16.mxu0 0
      %826 = vmatpush1.bf16.xpose.msra.mxu0 0
      %827 = vmatprep.subr.bf16.mxu0 0
      %828 = vmatpush1.bf16.xpose.msra.mxu0 0
      %829 = vmatprep.subr.bf16.mxu0 0
      %830 = vmatpush1.bf16.xpose.msra.mxu0 0
      %831 = vmatprep.subr.bf16.mxu0 0
      %832 = vmatpush1.bf16.xpose.msra.mxu0 0
      %833 = vmatprep.subr.bf16.mxu0 0
      %834 = vmatpush1.bf16.xpose.msra.mxu0 0
      %835 = vmatprep.mubr.bf16.mxu0 0
      %836 = vmatmul.mubr.bf16.gmra.mrb[0].mxu0 %v798
      %v837 = vpop.f32.mrb[0].mxu0
      %v838 = vadd.f32 0.0, %v837
      %v839 = vpop.f32.mrb[0].mxu0
      %v840 = vpop.f32.mrb[0].mxu0
      %v841 = vpop.f32.mrb[0].mxu0
      %842 = vdwg.mxu0
      %vm843 = vcmask 36864
      %v844 = vsel %vm843, %v838, -inf
      %845 = vmax.xlane.f32.xlu0 %v844
      %v846 = vpop.xlane.xlu0 %845
      %v847 = vsub.f32 %v838, %v846
      %v848 = vmul.f32 %v847, 1.442695
      %v849 = vpow.pop %v848
      %v850 = vsel %vm843, %v849, 0.0
      %851 = vadd.xlane.f32.xlu0 %v850
      %v852 = vpop.xlane.xlu0 %851
      %v853 = vrcp.pop %v852
      %v854 = vmul.f32 %v849, %v853
      %v855 = vpack.c.bf16 %v854, %v854
      %vm856 = vcmask 39936
      %v858 = vsel %vm856, %v855, 0
      %vm860 = vcmask 1041408
      %vm861 = vcmask 1042432
      %v862 = vsel %vm860, 4294967295, 65535
      %v863 = vsel %vm861, %v862, 0
      %v865 = vand.u32 %v792, %v863
      %867 = vmatprep.subr.bf16.mxu0 0
      %868 = vmatpush1.bf16.msra.mxu0 %v865
      %869 = vmatprep.subr.bf16.mxu0 0
      %870 = vmatpush1.bf16.msra.mxu0 0
      %871 = vmatprep.subr.bf16.mxu0 0
      %872 = vmatpush1.bf16.msra.mxu0 0
      %873 = vmatprep.subr.bf16.mxu0 0
      %874 = vmatpush1.bf16.msra.mxu0 0
      %875 = vmatprep.subr.bf16.mxu0 0
      %876 = vmatpush1.bf16.msra.mxu0 0
      %877 = vmatprep.subr.bf16.mxu0 0
      %878 = vmatpush1.bf16.msra.mxu0 0
      %879 = vmatprep.subr.bf16.mxu0 0
      %880 = vmatpush1.bf16.msra.mxu0 0
      %881 = vmatprep.subr.bf16.mxu0 0
      %882 = vmatpush1.bf16.msra.mxu0 0
      %883 = vmatprep.subr.bf16.mxu0 0
      %884 = vmatpush1.bf16.msra.mxu0 0
      %885 = vmatprep.subr.bf16.mxu0 0
      %886 = vmatpush1.bf16.msra.mxu0 0
      %887 = vmatprep.subr.bf16.mxu0 0
      %888 = vmatpush1.bf16.msra.mxu0 0
      %889 = vmatprep.subr.bf16.mxu0 0
      %890 = vmatpush1.bf16.msra.mxu0 0
      %891 = vmatprep.subr.bf16.mxu0 0
      %892 = vmatpush1.bf16.msra.mxu0 0
      %893 = vmatprep.subr.bf16.mxu0 0
      %894 = vmatpush1.bf16.msra.mxu0 0
      %895 = vmatprep.subr.bf16.mxu0 0
      %896 = vmatpush1.bf16.msra.mxu0 0
      %897 = vmatprep.subr.bf16.mxu0 0
      %898 = vmatpush1.bf16.msra.mxu0 0
      %899 = vmatprep.mubr.bf16.mxu0 0
      %900 = vmatmul.mubr.bf16.gmra.mrb[0].mxu0 %v858
      %v901 = vpop.f32.mrb[0].mxu0
      %v902 = vadd.f32 0.0, %v901
      %v903 = vpop.f32.mrb[0].mxu0
      %v904 = vpop.f32.mrb[0].mxu0
      %v905 = vpop.f32.mrb[0].mxu0
      %906 = vdwg.mxu0
      %v907 = vpack.c.bf16 %v902, %v902
      %vm908 = vcmask 124928
      %vm909 = vsmask.f32 2304
      %vm910 = vmand %vm908, %vm909
      %v911 = vld [vmem:[#allocation2] sm:$0x7]
      %v912 = vsel %vm910, %v907, %v911
      %913 = vst [vmem:[#allocation2] sm:$0x7] %v912
      %915 = vrot.lane.b32.xlu0 %v790, 112
      %v916 = vpop.permute.xlu0 %915
      %917 = vrot.lane.b32.xlu0 %v791, 48
      %v918 = vpop.permute.xlu0 %917
      %v920 = vsel %vm796, %v916, 0
      %v923 = vsel %vm796, %v918, 0
      %925 = vmatprep.subr.bf16.mxu0 0
      %926 = vmatpush1.bf16.xpose.msra.mxu0 %v923
      %927 = vmatprep.subr.bf16.mxu0 0
      %928 = vmatpush1.bf16.xpose.msra.mxu0 0
      %929 = vmatprep.subr.bf16.mxu0 0
      %930 = vmatpush1.bf16.xpose.msra.mxu0 0
      %931 = vmatprep.subr.bf16.mxu0 0
      %932 = vmatpush1.bf16.xpose.msra.mxu0 0
      %933 = vmatprep.subr.bf16.mxu0 0
      %934 = vmatpush1.bf16.xpose.msra.mxu0 0
      %935 = vmatprep.subr.bf16.mxu0 0
      %936 = vmatpush1.bf16.xpose.msra.mxu0 0
      %937 = vmatprep.subr.bf16.mxu0 0
      %938 = vmatpush1.bf16.xpose.msra.mxu0 0
      %939 = vmatprep.subr.bf16.mxu0 0
      %940 = vmatpush1.bf16.xpose.msra.mxu0 0
      %941 = vmatprep.subr.bf16.mxu0 0
      %942 = vmatpush1.bf16.xpose.msra.mxu0 0
      %943 = vmatprep.subr.bf16.mxu0 0
      %944 = vmatpush1.bf16.xpose.msra.mxu0 0
      %945 = vmatprep.subr.bf16.mxu0 0
      %946 = vmatpush1.bf16.xpose.msra.mxu0 0
      %947 = vmatprep.subr.bf16.mxu0 0
      %948 = vmatpush1.bf16.xpose.msra.mxu0 0
      %949 = vmatprep.subr.bf16.mxu0 0
      %950 = vmatpush1.bf16.xpose.msra.mxu0 0
      %951 = vmatprep.subr.bf16.mxu0 0
      %952 = vmatpush1.bf16.xpose.msra.mxu0 0
      %953 = vmatprep.subr.bf16.mxu0 0
      %954 = vmatpush1.bf16.xpose.msra.mxu0 0
      %955 = vmatprep.subr.bf16.mxu0 0
      %956 = vmatpush1.bf16.xpose.msra.mxu0 0
      %957 = vmatprep.mubr.bf16.mxu0 0
      %958 = vmatmul.mubr.bf16.gmra.mrb[0].mxu0 %v920
      %v959 = vpop.f32.mrb[0].mxu0
      %v960 = vadd.f32 0.0, %v959
      %v961 = vpop.f32.mrb[0].mxu0
      %v962 = vpop.f32.mrb[0].mxu0
      %v963 = vpop.f32.mrb[0].mxu0
      %964 = vdwg.mxu0
      %v965 = vsel %vm843, %v960, -inf
      %966 = vmax.xlane.f32.xlu0 %v965
      %v967 = vpop.xlane.xlu0 %966
      %v968 = vsub.f32 %v960, %v967
      %v969 = vmul.f32 %v968, 1.442695
      %v970 = vpow.pop %v969
      %v971 = vsel %vm843, %v970, 0.0
      %972 = vadd.xlane.f32.xlu0 %v971
      %v973 = vpop.xlane.xlu0 %972
      %v974 = vrcp.pop %v973
      %v975 = vmul.f32 %v970, %v974
      %v976 = vpack.c.bf16 %v975, %v975
      %978 = vrot.lane.b32.xlu0 %v792, 112
      %v979 = vpop.permute.xlu0 %978
      %v981 = vsel %vm856, %v976, 0
      %v984 = vand.u32 %v979, %v863
      %986 = vmatprep.subr.bf16.mxu0 0
      %987 = vmatpush1.bf16.msra.mxu0 %v984
      %988 = vmatprep.subr.bf16.mxu0 0
      %989 = vmatpush1.bf16.msra.mxu0 0
      %990 = vmatprep.subr.bf16.mxu0 0
      %991 = vmatpush1.bf16.msra.mxu0 0
      %992 = vmatprep.subr.bf16.mxu0 0
      %993 = vmatpush1.bf16.msra.mxu0 0
      %994 = vmatprep.subr.bf16.mxu0 0
      %995 = vmatpush1.bf16.msra.mxu0 0
      %996 = vmatprep.subr.bf16.mxu0 0
      %997 = vmatpush1.bf16.msra.mxu0 0
      %998 = vmatprep.subr.bf16.mxu0 0
      %999 = vmatpush1.bf16.msra.mxu0 0
      %1000 = vmatprep.subr.bf16.mxu0 0
      %1001 = vmatpush1.bf16.msra.mxu0 0
      %1002 = vmatprep.subr.bf16.mxu0 0
      %1003 = vmatpush1.bf16.msra.mxu0 0
      %1004 = vmatprep.subr.bf16.mxu0 0
      %1005 = vmatpush1.bf16.msra.mxu0 0
      %1006 = vmatprep.subr.bf16.mxu0 0
      %1007 = vmatpush1.bf16.msra.mxu0 0
      %1008 = vmatprep.subr.bf16.mxu0 0
      %1009 = vmatpush1.bf16.msra.mxu0 0
      %1010 = vmatprep.subr.bf16.mxu0 0
      %1011 = vmatpush1.bf16.msra.mxu0 0
      %1012 = vmatprep.subr.bf16.mxu0 0
      %1013 = vmatpush1.bf16.msra.mxu0 0
      %1014 = vmatprep.subr.bf16.mxu0 0
      %1015 = vmatpush1.bf16.msra.mxu0 0
      %1016 = vmatprep.subr.bf16.mxu0 0
      %1017 = vmatpush1.bf16.msra.mxu0 0
      %1018 = vmatprep.mubr.bf16.mxu0 0
      %1019 = vmatmul.mubr.bf16.gmra.mrb[0].mxu0 %v981
      %v1020 = vpop.f32.mrb[0].mxu0
      %v1021 = vadd.f32 0.0, %v1020
      %v1022 = vpop.f32.mrb[0].mxu0
      %v1023 = vpop.f32.mrb[0].mxu0
      %v1024 = vpop.f32.mrb[0].mxu0
      %1025 = vdwg.mxu0
      %v1026 = vpack.c.bf16 %v1021, %v1021
      %v1028 = vunpack.c.l.b16 %v1026
      %v1029 = vpack.c.b16 %v1028, %v1028
      %1030 = vrot.lane.b32.xlu0 %v1029, 16
      %v1031 = vpop.permute.xlu0 %1030
      %vm1033 = vcmask 256128
      %vm1034 = vmand %vm1033, %vm909
      %v1035 = vld [vmem:[#allocation2] sm:$0x7]
      %v1036 = vsel %vm1034, %v1031, %v1035
      %1037 = vst [vmem:[#allocation2] sm:$0x7] %v1036
      %1038 = vrot.lane.b32.xlu0 %v790, 96
      %v1039 = vpop.permute.xlu0 %1038
      %1040 = vrot.lane.b32.xlu0 %v791, 32
      %v1041 = vpop.permute.xlu0 %1040
      %v1043 = vsel %vm796, %v1039, 0
      %v1046 = vsel %vm796, %v1041, 0
      %1048 = vmatprep.subr.bf16.mxu0 0
      %1049 = vmatpush1.bf16.xpose.msra.mxu0 %v1046
      %1050 = vmatprep.subr.bf16.mxu0 0
      %1051 = vmatpush1.bf16.xpose.msra.mxu0 0
      %1052 = vmatprep.subr.bf16.mxu0 0
      %1053 = vmatpush1.bf16.xpose.msra.mxu0 0
      %1054 = vmatprep.subr.bf16.mxu0 0
      %1055 = vmatpush1.bf16.xpose.msra.mxu0 0
      %1056 = vmatprep.subr.bf16.mxu0 0
      %1057 = vmatpush1.bf16.xpose.msra.mxu0 0
      %1058 = vmatprep.subr.bf16.mxu0 0
      %1059 = vmatpush1.bf16.xpose.msra.mxu0 0
      %1060 = vmatprep.subr.bf16.mxu0 0
      %1061 = vmatpush1.bf16.xpose.msra.mxu0 0
      %1062 = vmatprep.subr.bf16.mxu0 0
      %1063 = vmatpush1.bf16.xpose.msra.mxu0 0
      %1064 = vmatprep.subr.bf16.mxu0 0
      %1065 = vmatpush1.bf16.xpose.msra.mxu0 0
      %1066 = vmatprep.subr.bf16.mxu0 0
      %1067 = vmatpush1.bf16.xpose.msra.mxu0 0
      %1068 = vmatprep.subr.bf16.mxu0 0
      %1069 = vmatpush1.bf16.xpose.msra.mxu0 0
      %1070 = vmatprep.subr.bf16.mxu0 0
      %1071 = vmatpush1.bf16.xpose.msra.mxu0 0
      %1072 = vmatprep.subr.bf16.mxu0 0
      %1073 = vmatpush1.bf16.xpose.msra.mxu0 0
      %1074 = vmatprep.subr.bf16.mxu0 0
      %1075 = vmatpush1.bf16.xpose.msra.mxu0 0
      %1076 = vmatprep.subr.bf16.mxu0 0
      %1077 = vmatpush1.bf16.xpose.msra.mxu0 0
      %1078 = vmatprep.subr.bf16.mxu0 0
      %1079 = vmatpush1.bf16.xpose.msra.mxu0 0
      %1080 = vmatprep.mubr.bf16.mxu0 0
      %1081 = vmatmul.mubr.bf16.gmra.mrb[0].mxu0 %v1043
      %v1082 = vpop.f32.mrb[0].mxu0
      %v1083 = vadd.f32 0.0, %v1082
      %v1084 = vpop.f32.mrb[0].mxu0
      %v1085 = vpop.f32.mrb[0].mxu0
      %v1086 = vpop.f32.mrb[0].mxu0
      %1087 = vdwg.mxu0
      %v1088 = vsel %vm843, %v1083, -inf
      %1089 = vmax.xlane.f32.xlu0 %v1088
      %v1090 = vpop.xlane.xlu0 %1089
      %v1091 = vsub.f32 %v1083, %v1090
      %v1092 = vmul.f32 %v1091, 1.442695
      %v1093 = vpow.pop %v1092
      %v1094 = vsel %vm843, %v1093, 0.0
      %1095 = vadd.xlane.f32.xlu0 %v1094
      %v1096 = vpop.xlane.xlu0 %1095
      %v1097 = vrcp.pop %v1096
      %v1098 = vmul.f32 %v1093, %v1097
      %v1099 = vpack.c.bf16 %v1098, %v1098
      %1100 = vrot.lane.b32.xlu0 %v792, 96
      %v1101 = vpop.permute.xlu0 %1100
      %v1103 = vsel %vm856, %v1099, 0
      %v1106 = vand.u32 %v1101, %v863
      %1108 = vmatprep.subr.bf16.mxu0 0
      %1109 = vmatpush1.bf16.msra.mxu0 %v1106
      %1110 = vmatprep.subr.bf16.mxu0 0
      %1111 = vmatpush1.bf16.msra.mxu0 0
      %1112 = vmatprep.subr.bf16.mxu0 0
      %1113 = vmatpush1.bf16.msra.mxu0 0
      %1114 = vmatprep.subr.bf16.mxu0 0
      %1115 = vmatpush1.bf16.msra.mxu0 0
      %1116 = vmatprep.subr.bf16.mxu0 0
      %1117 = vmatpush1.bf16.msra.mxu0 0
      %1118 = vmatprep.subr.bf16.mxu0 0
      %1119 = vmatpush1.bf16.msra.mxu0 0
      %1120 = vmatprep.subr.bf16.mxu0 0
      %1121 = vmatpush1.bf16.msra.mxu0 0
      %1122 = vmatprep.subr.bf16.mxu0 0
      %1123 = vmatpush1.bf16.msra.mxu0 0
      %1124 = vmatprep.subr.bf16.mxu0 0
      %1125 = vmatpush1.bf16.msra.mxu0 0
      %1126 = vmatprep.subr.bf16.mxu0 0
      %1127 = vmatpush1.bf16.msra.mxu0 0
      %1128 = vmatprep.subr.bf16.mxu0 0
      %1129 = vmatpush1.bf16.msra.mxu0 0
      %1130 = vmatprep.subr.bf16.mxu0 0
      %1131 = vmatpush1.bf16.msra.mxu0 0
      %1132 = vmatprep.subr.bf16.mxu0 0
      %1133 = vmatpush1.bf16.msra.mxu0 0
      %1134 = vmatprep.subr.bf16.mxu0 0
      %1135 = vmatpush1.bf16.msra.mxu0 0
      %1136 = vmatprep.subr.bf16.mxu0 0
      %1137 = vmatpush1.bf16.msra.mxu0 0
      %1138 = vmatprep.subr.bf16.mxu0 0
      %1139 = vmatpush1.bf16.msra.mxu0 0
      %1140 = vmatprep.mubr.bf16.mxu0 0
      %1141 = vmatmul.mubr.bf16.gmra.mrb[0].mxu0 %v1103
      %v1142 = vpop.f32.mrb[0].mxu0
      %v1143 = vadd.f32 0.0, %v1142
      %v1144 = vpop.f32.mrb[0].mxu0
      %v1145 = vpop.f32.mrb[0].mxu0
      %v1146 = vpop.f32.mrb[0].mxu0
      %1147 = vdwg.mxu0
      %v1148 = vpack.c.bf16 %v1143, %v1143
      %v1150 = vunpack.c.l.b16 %v1148
      %v1151 = vpack.c.b16 %v1150, %v1150
      %1152 = vrot.lane.b32.xlu0 %v1151, 32
      %v1153 = vpop.permute.xlu0 %1152
      %vm1155 = vcmask 387328
      %vm1156 = vmand %vm1155, %vm909
      %v1157 = vld [vmem:[#allocation2] sm:$0x7]
      %v1158 = vsel %vm1156, %v1153, %v1157
      %1159 = vst [vmem:[#allocation2] sm:$0x7] %v1158
      %1160 = vrot.lane.b32.xlu0 %v790, 80
      %v1161 = vpop.permute.xlu0 %1160
      %1162 = vrot.lane.b32.xlu0 %v791, 16
      %v1163 = vpop.permute.xlu0 %1162
      %v1165 = vsel %vm796, %v1161, 0
      %v1168 = vsel %vm796, %v1163, 0
      %1170 = vmatprep.subr.bf16.mxu0 0
      %1171 = vmatpush1.bf16.xpose.msra.mxu0 %v1168
      %1172 = vmatprep.subr.bf16.mxu0 0
      %1173 = vmatpush1.bf16.xpose.msra.mxu0 0
      %1174 = vmatprep.subr.bf16.mxu0 0
      %1175 = vmatpush1.bf16.xpose.msra.mxu0 0
      %1176 = vmatprep.subr.bf16.mxu0 0
      %1177 = vmatpush1.bf16.xpose.msra.mxu0 0
      %1178 = vmatprep.subr.bf16.mxu0 0
      %1179 = vmatpush1.bf16.xpose.msra.mxu0 0
      %1180 = vmatprep.subr.bf16.mxu0 0
      %1181 = vmatpush1.bf16.xpose.msra.mxu0 0
      %1182 = vmatprep.subr.bf16.mxu0 0
      %1183 = vmatpush1.bf16.xpose.msra.mxu0 0
      %1184 = vmatprep.subr.bf16.mxu0 0
      %1185 = vmatpush1.bf16.xpose.msra.mxu0 0
      %1186 = vmatprep.subr.bf16.mxu0 0
      %1187 = vmatpush1.bf16.xpose.msra.mxu0 0
      %1188 = vmatprep.subr.bf16.mxu0 0
      %1189 = vmatpush1.bf16.xpose.msra.mxu0 0
      %1190 = vmatprep.subr.bf16.mxu0 0
      %1191 = vmatpush1.bf16.xpose.msra.mxu0 0
      %1192 = vmatprep.subr.bf16.mxu0 0
      %1193 = vmatpush1.bf16.xpose.msra.mxu0 0
      %1194 = vmatprep.subr.bf16.mxu0 0
      %1195 = vmatpush1.bf16.xpose.msra.mxu0 0
      %1196 = vmatprep.subr.bf16.mxu0 0
      %1197 = vmatpush1.bf16.xpose.msra.mxu0 0
      %1198 = vmatprep.subr.bf16.mxu0 0
      %1199 = vmatpush1.bf16.xpose.msra.mxu0 0
      %1200 = vmatprep.subr.bf16.mxu0 0
      %1201 = vmatpush1.bf16.xpose.msra.mxu0 0
      %1202 = vmatprep.mubr.bf16.mxu0 0
      %1203 = vmatmul.mubr.bf16.gmra.mrb[0].mxu0 %v1165
      %v1204 = vpop.f32.mrb[0].mxu0
      %v1205 = vadd.f32 0.0, %v1204
      %v1206 = vpop.f32.mrb[0].mxu0
      %v1207 = vpop.f32.mrb[0].mxu0
      %v1208 = vpop.f32.mrb[0].mxu0
      %1209 = vdwg.mxu0
      %v1210 = vsel %vm843, %v1205, -inf
      %1211 = vmax.xlane.f32.xlu0 %v1210
      %v1212 = vpop.xlane.xlu0 %1211
      %v1213 = vsub.f32 %v1205, %v1212
      %v1214 = vmul.f32 %v1213, 1.442695
      %v1215 = vpow.pop %v1214
      %v1216 = vsel %vm843, %v1215, 0.0
      %1217 = vadd.xlane.f32.xlu0 %v1216
      %v1218 = vpop.xlane.xlu0 %1217
      %v1219 = vrcp.pop %v1218
      %v1220 = vmul.f32 %v1215, %v1219
      %v1221 = vpack.c.bf16 %v1220, %v1220
      %1222 = vrot.lane.b32.xlu0 %v792, 80
      %v1223 = vpop.permute.xlu0 %1222
      %v1225 = vsel %vm856, %v1221, 0
      %v1228 = vand.u32 %v1223, %v863
      %1230 = vmatprep.subr.bf16.mxu0 0
      %1231 = vmatpush1.bf16.msra.mxu0 %v1228
      %1232 = vmatprep.subr.bf16.mxu0 0
      %1233 = vmatpush1.bf16.msra.mxu0 0
      %1234 = vmatprep.subr.bf16.mxu0 0
      %1235 = vmatpush1.bf16.msra.mxu0 0
      %1236 = vmatprep.subr.bf16.mxu0 0
      %1237 = vmatpush1.bf16.msra.mxu0 0
      %1238 = vmatprep.subr.bf16.mxu0 0
      %1239 = vmatpush1.bf16.msra.mxu0 0
      %1240 = vmatprep.subr.bf16.mxu0 0
      %1241 = vmatpush1.bf16.msra.mxu0 0
      %1242 = vmatprep.subr.bf16.mxu0 0
      %1243 = vmatpush1.bf16.msra.mxu0 0
      %1244 = vmatprep.subr.bf16.mxu0 0
      %1245 = vmatpush1.bf16.msra.mxu0 0
      %1246 = vmatprep.subr.bf16.mxu0 0
      %1247 = vmatpush1.bf16.msra.mxu0 0
      %1248 = vmatprep.subr.bf16.mxu0 0
      %1249 = vmatpush1.bf16.msra.mxu0 0
      %1250 = vmatprep.subr.bf16.mxu0 0
      %1251 = vmatpush1.bf16.msra.mxu0 0
      %1252 = vmatprep.subr.bf16.mxu0 0
      %1253 = vmatpush1.bf16.msra.mxu0 0
      %1254 = vmatprep.subr.bf16.mxu0 0
      %1255 = vmatpush1.bf16.msra.mxu0 0
      %1256 = vmatprep.subr.bf16.mxu0 0
      %1257 = vmatpush1.bf16.msra.mxu0 0
      %1258 = vmatprep.subr.bf16.mxu0 0
      %1259 = vmatpush1.bf16.msra.mxu0 0
      %1260 = vmatprep.subr.bf16.mxu0 0
      %1261 = vmatpush1.bf16.msra.mxu0 0
      %1262 = vmatprep.mubr.bf16.mxu0 0
      %1263 = vmatmul.mubr.bf16.gmra.mrb[0].mxu0 %v1225
      %v1264 = vpop.f32.mrb[0].mxu0
      %v1265 = vadd.f32 0.0, %v1264
      %v1266 = vpop.f32.mrb[0].mxu0
      %v1267 = vpop.f32.mrb[0].mxu0
      %v1268 = vpop.f32.mrb[0].mxu0
      %1269 = vdwg.mxu0
      %v1270 = vpack.c.bf16 %v1265, %v1265
      %v1272 = vunpack.c.l.b16 %v1270
      %v1273 = vpack.c.b16 %v1272, %v1272
      %1274 = vrot.lane.b32.xlu0 %v1273, 48
      %v1275 = vpop.permute.xlu0 %1274
      %vm1277 = vcmask 518528
      %vm1278 = vmand %vm1277, %vm909
      %v1279 = vld [vmem:[#allocation2] sm:$0x7]
      %v1280 = vsel %vm1278, %v1275, %v1279
      %1281 = vst [vmem:[#allocation2] sm:$0x7] %v1280
      %v1282 = vld [vmem:[#allocation2] sm:$0x7]
      %v1283 = vld [vmem:[%s613] sm:$0xf]
      %v1284 = vld [vmem:[%s613 + $0x4] sm:$0xf]
      %v1285 = vld [vmem:[%s613 + $0x8] sm:$0xf]
      %v1286 = vld [vmem:[%s613 + $0xc] sm:$0xf]
      %v1287 = vld [vmem:[%s613 + $0x10] sm:$0xf]
      %v1288 = vld [vmem:[%s613 + $0x14] sm:$0xf]
      %v1289 = vld [vmem:[%s613 + $0x18] sm:$0xf]
      %v1290 = vld [vmem:[%s613 + $0x1c] sm:$0xf]
      %v1299 = vunpack.c.l.b16 %v1283
      %v1300 = vunpack.c.l.b16 %v1284
      %v1301 = vunpack.c.l.b16 %v1285
      %v1302 = vunpack.c.l.b16 %v1286
      %v1303 = vunpack.c.l.b16 %v1287
      %v1304 = vunpack.c.l.b16 %v1288
      %v1305 = vunpack.c.l.b16 %v1289
      %v1306 = vunpack.c.l.b16 %v1290
      %v1307 = vpack.c.b16 %v1300, %v1299
      %v1308 = vpack.c.b16 %v1302, %v1301
      %v1309 = vpack.c.b16 %v1304, %v1303
      %v1310 = vpack.c.b16 %v1306, %v1305
      %v1316 = vsel %vm744, %v1282, 0
      %1318 = vmatprep.subr.bf16.mxu0 0
      %1319 = vmatpush1.bf16.msra.mxu0 %v1307
      %1320 = vmatprep.subr.bf16.mxu0 0
      %1321 = vmatpush1.bf16.msra.mxu0 %v1308
      %1322 = vmatprep.subr.bf16.mxu0 0
      %1323 = vmatpush1.bf16.msra.mxu0 %v1309
      %1324 = vmatprep.subr.bf16.mxu0 0
      %1325 = vmatpush1.bf16.msra.mxu0 %v1310
      %1326 = vmatprep.subr.bf16.mxu0 0
      %1327 = vmatpush1.bf16.msra.mxu0 0
      %1328 = vmatprep.subr.bf16.mxu0 0
      %1329 = vmatpush1.bf16.msra.mxu0 0
      %1330 = vmatprep.subr.bf16.mxu0 0
      %1331 = vmatpush1.bf16.msra.mxu0 0
      %1332 = vmatprep.subr.bf16.mxu0 0
      %1333 = vmatpush1.bf16.msra.mxu0 0
      %1334 = vmatprep.subr.bf16.mxu0 0
      %1335 = vmatpush1.bf16.msra.mxu0 0
      %1336 = vmatprep.subr.bf16.mxu0 0
      %1337 = vmatpush1.bf16.msra.mxu0 0
      %1338 = vmatprep.subr.bf16.mxu0 0
      %1339 = vmatpush1.bf16.msra.mxu0 0
      %1340 = vmatprep.subr.bf16.mxu0 0
      %1341 = vmatpush1.bf16.msra.mxu0 0
      %1342 = vmatprep.subr.bf16.mxu0 0
      %1343 = vmatpush1.bf16.msra.mxu0 0
      %1344 = vmatprep.subr.bf16.mxu0 0
      %1345 = vmatpush1.bf16.msra.mxu0 0
      %1346 = vmatprep.subr.bf16.mxu0 0
      %1347 = vmatpush1.bf16.msra.mxu0 0
      %1348 = vmatprep.subr.bf16.mxu0 0
      %1349 = vmatpush1.bf16.msra.mxu0 0
      %1350 = vmatprep.mubr.bf16.mxu0 0
      %1351 = vmatmul.mubr.bf16.gmra.mrb[0].mxu0 %v1316
      %v1352 = vpop.f32.mrb[0].mxu0
      %v1353 = vadd.f32 0.0, %v1352
      %v1354 = vpop.f32.mrb[0].mxu0
      %v1355 = vpop.f32.mrb[0].mxu0
      %v1356 = vpop.f32.mrb[0].mxu0
      %1357 = vdwg.mxu0
      %v1358 = vadd.f32 %v651, %v1353
      %v1359 = vld [vmem:[%s616] sm:$0x1]
      %v1361 = vlaneseq
      %v1362 = vshrl.u32 %v1361, 7
      %v1363 = vsub.s32 0, %v1362
      %v1364 = vrot.slane %v1359, %v1363
      %v1366 = vadd.f32 %v1358, %v1364
      %v1367 = vld [vmem:[%s619] sm:$0x1]
      %v1368 = vld [vmem:[%s622] sm:$0x1]
      %v1369 = vsel %vm654, %v1366, 0.0
      %1370 = vadd.xlane.f32.xlu0 %v1369
      %v1371 = vpop.xlane.xlu0 %1370
      %v1372 = vmul.f32 %v1371, %v658
      %v1373 = vsub.f32 %v1366, %v1372
      %v1374 = vmul.f32 %v1373, %v1373
      %v1375 = vsel %vm654, %v1374, 0.0
      %1376 = vadd.xlane.f32.xlu0 %v1375
      %v1377 = vpop.xlane.xlu0 %1376
      %v1378 = vmul.f32 %v1377, %v658
      %v1379 = vadd.f32 %v1378, 1e-06
      %v1380 = vrsqrt.pop %v1379
      %v1381 = vmul.f32 %v1373, %v1380
      %v1383 = vlaneseq
      %v1384 = vshrl.u32 %v1383, 7
      %v1385 = vsub.s32 0, %v1384
      %v1386 = vrot.slane %v1367, %v1385
      %v1388 = vmul.f32 %v1381, %v1386
      %v1390 = vlaneseq
      %v1391 = vshrl.u32 %v1390, 7
      %v1392 = vsub.s32 0, %v1391
      %v1393 = vrot.slane %v1368, %v1392
      %v1395 = vadd.f32 %v1388, %v1393
      %v1396 = vpack.c.bf16 %v1395, %v1395
      %v1397 = vld [vmem:[%s627] sm:$0xf]
      %v1398 = vld [vmem:[%s627 + $0x4] sm:$0xf]
      %v1399 = vld [vmem:[%s627 + $0x8] sm:$0xf]
      %v1400 = vld [vmem:[%s627 + $0xc] sm:$0xf]
      %v1401 = vld [vmem:[%s627 + $0x10] sm:$0xf]
      %v1402 = vld [vmem:[%s627 + $0x14] sm:$0xf]
      %v1403 = vld [vmem:[%s627 + $0x18] sm:$0xf]
      %v1404 = vld [vmem:[%s627 + $0x1c] sm:$0xf]
      %v1405 = vld [vmem:[%s630] sm:$0x1]
      %v1407 = vlaneseq
      %v1408 = vshrl.u32 %v1407, 7
      %v1409 = vsub.s32 0, %v1408
      %v1410 = vrot.slane %v1405, %v1409
      %v1420 = vunpack.c.l.b16 %v1397
      %v1421 = vunpack.c.l.b16 %v1398
      %v1422 = vunpack.c.l.b16 %v1399
      %v1423 = vunpack.c.l.b16 %v1400
      %v1424 = vunpack.c.l.b16 %v1401
      %v1425 = vunpack.c.l.b16 %v1402
      %v1426 = vunpack.c.l.b16 %v1403
      %v1427 = vunpack.c.l.b16 %v1404
      %v1428 = vpack.c.b16 %v1421, %v1420
      %v1429 = vpack.c.b16 %v1423, %v1422
      %v1430 = vpack.c.b16 %v1425, %v1424
      %v1431 = vpack.c.b16 %v1427, %v1426
      %v1437 = vsel %vm744, %v1396, 0
      %1439 = vmatprep.subr.bf16.mxu0 0
      %1440 = vmatpush1.bf16.msra.mxu0 %v1428
      %1441 = vmatprep.subr.bf16.mxu0 0
      %1442 = vmatpush1.bf16.msra.mxu0 %v1429
      %1443 = vmatprep.subr.bf16.mxu0 0
      %1444 = vmatpush1.bf16.msra.mxu0 %v1430
      %1445 = vmatprep.subr.bf16.mxu0 0
      %1446 = vmatpush1.bf16.msra.mxu0 %v1431
      %1447 = vmatprep.subr.bf16.mxu0 0
      %1448 = vmatpush1.bf16.msra.mxu0 0
      %1449 = vmatprep.subr.bf16.mxu0 0
      %1450 = vmatpush1.bf16.msra.mxu0 0
      %1451 = vmatprep.subr.bf16.mxu0 0
      %1452 = vmatpush1.bf16.msra.mxu0 0
      %1453 = vmatprep.subr.bf16.mxu0 0
      %1454 = vmatpush1.bf16.msra.mxu0 0
      %1455 = vmatprep.subr.bf16.mxu0 0
      %1456 = vmatpush1.bf16.msra.mxu0 0
      %1457 = vmatprep.subr.bf16.mxu0 0
      %1458 = vmatpush1.bf16.msra.mxu0 0
      %1459 = vmatprep.subr.bf16.mxu0 0
      %1460 = vmatpush1.bf16.msra.mxu0 0
      %1461 = vmatprep.subr.bf16.mxu0 0
      %1462 = vmatpush1.bf16.msra.mxu0 0
      %1463 = vmatprep.subr.bf16.mxu0 0
      %1464 = vmatpush1.bf16.msra.mxu0 0
      %1465 = vmatprep.subr.bf16.mxu0 0
      %1466 = vmatpush1.bf16.msra.mxu0 0
      %1467 = vmatprep.subr.bf16.mxu0 0
      %1468 = vmatpush1.bf16.msra.mxu0 0
      %1469 = vmatprep.subr.bf16.mxu0 0
      %1470 = vmatpush1.bf16.msra.mxu0 0
      %1471 = vmatprep.mubr.bf16.mxu0 0
      %1472 = vmatmul.mubr.bf16.gmra.mrb[0].mxu0 %v1437
      %v1473 = vpop.f32.mrb[0].mxu0
      %v1474 = vadd.f32 %v1410, %v1473
      %v1475 = vpop.f32.mrb[0].mxu0
      %v1476 = vpop.f32.mrb[0].mxu0
      %v1477 = vpop.f32.mrb[0].mxu0
      %1478 = vdwg.mxu0
      %v1479 = vmul.f32 %v1474, 0.5
      %v1480 = vmul.f32 %v1474, 0.70710677
      %v1481 = verf.f32.pop %v1480
      %v1482 = vadd.f32 %v1481, 1.0
      %v1483 = vmul.f32 %v1479, %v1482
      %v1484 = vpack.c.bf16 %v1483, %v1483
      %v1485 = vld [vmem:[%s635] sm:$0xf]
      %v1486 = vld [vmem:[%s635 + $0x4] sm:$0xf]
      %v1487 = vld [vmem:[%s635 + $0x8] sm:$0xf]
      %v1488 = vld [vmem:[%s635 + $0xc] sm:$0xf]
      %v1489 = vld [vmem:[%s635 + $0x10] sm:$0xf]
      %v1490 = vld [vmem:[%s635 + $0x14] sm:$0xf]
      %v1491 = vld [vmem:[%s635 + $0x18] sm:$0xf]
      %v1492 = vld [vmem:[%s635 + $0x1c] sm:$0xf]
      %v1493 = vld [vmem:[%s635 + $0x20] sm:$0xf]
      %v1494 = vld [vmem:[%s635 + $0x24] sm:$0xf]
      %v1495 = vld [vmem:[%s635 + $0x28] sm:$0xf]
      %v1496 = vld [vmem:[%s635 + $0x2c] sm:$0xf]
      %v1497 = vld [vmem:[%s635 + $0x30] sm:$0xf]
      %v1498 = vld [vmem:[%s635 + $0x34] sm:$0xf]
      %v1499 = vld [vmem:[%s635 + $0x38] sm:$0xf]
      %v1500 = vld [vmem:[%s635 + $0x3c] sm:$0xf]
      %v1501 = vld [vmem:[%s638] sm:$0x1]
      %v1503 = vlaneseq
      %v1504 = vshrl.u32 %v1503, 7
      %v1505 = vsub.s32 0, %v1504
      %v1506 = vrot.slane %v1501, %v1505
      %v1524 = vunpack.c.l.b16 %v1485
      %v1525 = vunpack.c.l.b16 %v1486
      %v1526 = vunpack.c.l.b16 %v1487
      %v1527 = vunpack.c.l.b16 %v1488
      %v1528 = vunpack.c.l.b16 %v1489
      %v1529 = vunpack.c.l.b16 %v1490
      %v1530 = vunpack.c.l.b16 %v1491
      %v1531 = vunpack.c.l.b16 %v1492
      %v1532 = vunpack.c.l.b16 %v1493
      %v1533 = vunpack.c.l.b16 %v1494
      %v1534 = vunpack.c.l.b16 %v1495
      %v1535 = vunpack.c.l.b16 %v1496
      %v1536 = vunpack.c.l.b16 %v1497
      %v1537 = vunpack.c.l.b16 %v1498
      %v1538 = vunpack.c.l.b16 %v1499
      %v1539 = vunpack.c.l.b16 %v1500
      %v1540 = vpack.c.b16 %v1525, %v1524
      %v1541 = vpack.c.b16 %v1527, %v1526
      %v1542 = vpack.c.b16 %v1529, %v1528
      %v1543 = vpack.c.b16 %v1531, %v1530
      %v1544 = vpack.c.b16 %v1533, %v1532
      %v1545 = vpack.c.b16 %v1535, %v1534
      %v1546 = vpack.c.b16 %v1537, %v1536
      %v1547 = vpack.c.b16 %v1539, %v1538
      %1556 = vmatprep.subr.bf16.mxu0 0
      %1557 = vmatpush1.bf16.msra.mxu0 %v1540
      %1558 = vmatprep.subr.bf16.mxu0 0
      %1559 = vmatpush1.bf16.msra.mxu0 %v1541
      %1560 = vmatprep.subr.bf16.mxu0 0
      %1561 = vmatpush1.bf16.msra.mxu0 %v1542
      %1562 = vmatprep.subr.bf16.mxu0 0
      %1563 = vmatpush1.bf16.msra.mxu0 %v1543
      %1564 = vmatprep.subr.bf16.mxu0 0
      %1565 = vmatpush1.bf16.msra.mxu0 %v1544
      %1566 = vmatprep.subr.bf16.mxu0 0
      %1567 = vmatpush1.bf16.msra.mxu0 %v1545
      %1568 = vmatprep.subr.bf16.mxu0 0
      %1569 = vmatpush1.bf16.msra.mxu0 %v1546
      %1570 = vmatprep.subr.bf16.mxu0 0
      %1571 = vmatpush1.bf16.msra.mxu0 %v1547
      %1572 = vmatprep.subr.bf16.mxu0 0
      %1573 = vmatpush1.bf16.msra.mxu0 0
      %1574 = vmatprep.subr.bf16.mxu0 0
      %1575 = vmatpush1.bf16.msra.mxu0 0
      %1576 = vmatprep.subr.bf16.mxu0 0
      %1577 = vmatpush1.bf16.msra.mxu0 0
      %1578 = vmatprep.subr.bf16.mxu0 0
      %1579 = vmatpush1.bf16.msra.mxu0 0
      %1580 = vmatprep.subr.bf16.mxu0 0
      %1581 = vmatpush1.bf16.msra.mxu0 0
      %1582 = vmatprep.subr.bf16.mxu0 0
      %1583 = vmatpush1.bf16.msra.mxu0 0
      %1584 = vmatprep.subr.bf16.mxu0 0
      %1585 = vmatpush1.bf16.msra.mxu0 0
      %1586 = vmatprep.subr.bf16.mxu0 0
      %1587 = vmatpush1.bf16.msra.mxu0 0
      %1588 = vmatprep.mubr.bf16.mxu0 0
      %1589 = vmatmul.mubr.bf16.gmra.mrb[0].mxu0 %v1484
      %v1590 = vpop.f32.mrb[0].mxu0
      %v1591 = vadd.f32 %v1506, %v1590
      %v1592 = vpop.f32.mrb[0].mxu0
      %v1593 = vpop.f32.mrb[0].mxu0
      %v1594 = vpop.f32.mrb[0].mxu0
      %1595 = vdwg.mxu0
      %v1596 = vadd.f32 %v1366, %v1591
      %1597 = vst.msk [vmem:[%s642] sm:$0x1f] %vm654, %v1596
      %p1598 = scmp.lt.s32.totalorder %s28, 1
      %s1599 = scalar_select %p1598, %s28, 1
      %s1600 = smul.addr %s1599, 8
      %s1601 = scalar_lea.vmem %s13, %s1600
      // Predicated region
      $region77: #{vit_forward.4} parent=71 // pred_check
        %p1602 = pneg %p392
      $region78: #{vit_forward.4} parent=71 // pred_check_branch
        %1604 = sbr.rel (%p1602) target = $region80
      $region79: #{vit_forward.4} parent=71 // pred_region
        _
      $region80: #{vit_forward.4} parent=71 // pred_fallthru
        _
    $region72: #{vit_forward.4} parent=5 // pred_fallthru
      _
    %p1605 = scmp.le.s32.totalorder 2, %s19
    // Predicated region
    $region81: #{vit_forward.4} parent=5 // pred_check
      %p1606 = pneg %p1605
    $region82: #{vit_forward.4} parent=5 // pred_check_branch
      %1608 = sbr.rel (%p1606) target = $region84
    $region83: #{vit_forward.4} parent=5 // pred_region
      %s1609 = ssub.s32 %s19, 2
      // Predicated region
      $region85: #{vit_forward.4} parent=83 // pred_check
        %p1610 = pneg %p398
      $region86: #{vit_forward.4} parent=83 // pred_check_branch
        %1612 = sbr.rel (%p1610) target = $region88
      $region87: #{vit_forward.4} parent=83 // pred_region
        %p1613 = scmp.lt.s32.totalorder %s30, 1
        %s1614 = scalar_select %p1613, %s30, 1
        %s1615 = smul.addr %s1614, 8
        %s1616 = scalar_lea.vmem %s13, %s1615
      $region88: #{vit_forward.4} parent=83 // pred_fallthru
        _
    $region84: #{vit_forward.4} parent=5 // pred_fallthru
      _
  $region6: #{vit_forward.4} parent=0 // loop_footer
    %s23 = sadd.s32 1, %s19
  $region7: #{vit_forward.4} parent=0 // loop_footer_branch
    %18 = sbr.rel target = $region3
  $region8: #{vit_forward.4} parent=0 // loop_exit
    _

</llo_original>
